<compile_context>
chip_gen: v7x
topology: tpu7x:2x2x1
jax: 0.10.0
libtpu: 0.0.40
codegen_flags: <defaults>
</compile_context>

<pallas_src>
import functools

import jax
import jax.numpy as jnp
from jax import lax
from jax.experimental import pallas as pl
from jax.experimental.pallas import tpu as pltpu

NQ = 20                      # APLoss quantization bins (nq), min=0, max=1
HALF_A = 0.5 * (NQ - 1.0)    # folds the cosine [-1,1] -> [0,1] rescale into the slope a=nq-1


def _pick_tile(m, prefs):
    for t in prefs:
        if m % t == 0:
            return t
    return m


def _tn_prefs():
    """Query-tile preference matched to MXU output width (256 on v6e/v7x, 128 on <= v5)."""
    try:
        kind = jax.devices()[0].device_kind.lower()
    except Exception:
        kind = ""
    if any(f"v{g}" in kind for g in (2, 3, 4, 5)):
        return (128, 64, 32, 16, 8)
    return (256, 128, 64, 32, 16, 8)


def _pixel_ap_kernel(tpos_ref, f1_ref, f2_ref, ap_ref, sacc_ref, *, nq, m_total):
    """One grid step = (batch b, query tile i, database chunk c).

    tpos_ref: (1, 1, TN) f32   quantizer-domain score of each query at its target
                               (-1.0 marks queries with no in-bounds correspondence)
    f1_ref  : (1, C, TN) bf16  query descriptors, channels-major (chunk-invariant)
    f2_ref  : (1, TC, C) bf16  database descriptors (chunk c)
    ap_ref  : (1, 1, TN) f32   per-query AP (written only on the last chunk)
    sacc_ref: (nq-1, TN) f32   running S_k = sum_m relu(t_m + k + 2 - nq), k < nq-1
    """
    c = pl.program_id(2)
    nc = pl.num_programs(2)

    @pl.when(c == 0)
    def _init():
        sacc_ref[...] = jnp.zeros_like(sacc_ref)

    q = f1_ref[0]                       # (C, TN) bf16
    db = f2_ref[0]                      # (TC, C) bf16
    tc = db.shape[0]

    # scores s[m, j] = <db_m, q_j> -- native (M,K)x(K,N) layout (no per-chunk transpose)
    s = lax.dot_general(db, q, (((1,), (0,)), ((), ())),
                        preferred_element_type=jnp.float32)          # (TC, TN) f32

    # Quantizer-domain score t = a * (0.5*(s+1)) in [0, nq-1]; kept bf16 so the
    # per-bin VALU max and the reduction-matmul RHS stay packed (2x VALU / 2x MXU push).
    t = (HALF_A * s + HALF_A).astype(jnp.bfloat16)                   # (TC, TN) bf16

    # ReLU-difference form of the cumulative quantizer: per chunk we only need
    #   S_k = sum_m max(t_m, nq-2-k) + TC*(k+2-nq)   for k = 0..nq-2
    # (one packed max + one bf16 MXU reduction per bin); the per-chunk constant
    # keeps the accumulated S_k well-conditioned.  Differences and the statically
    # known top bin (C_{nq-1} == 1 -> count == M) are handled in _finalize.
    # TODO(synk): a register-resident sub-block loop over TC (k-loop innermost) would
    # avoid re-streaming t from VMEM per bin; left out to keep lowering simple.
    ones_row = jnp.ones((1, tc), jnp.bfloat16)
    parts = []
    for k in range(nq - 1):
        thr = float(nq - 2 - k)
        mk = jnp.maximum(t, thr)                                     # bf16 (TC, TN)
        rk = lax.dot_general(ones_row, mk, (((1,), (0,)), ((), ())),
                             preferred_element_type=jnp.float32)     # (1, TN) f32
        parts.append(rk + float(tc * (k + 2 - nq)))
    # single batched scratch read-modify-write per chunk (no per-row masked RMWs)
    sacc_ref[...] = sacc_ref[...] + jnp.concatenate(parts, axis=0)

    @pl.when(c == nc - 1)
    def _finalize():
        tpos = tpos_ref[0]                          # (1, TN) f32
        acc = sacc_ref[...]                         # (nq-1, TN) f32
        m_f = float(m_total)
        racc_prev = jnp.zeros_like(tpos)
        s_prev = jnp.zeros_like(tpos)
        num = jnp.zeros_like(tpos)
        for k in range(nq):
            ck = float(k + 2 - nq)
            if k < nq - 1:
                s_k = acc[k:k + 1, :]
                cnbs_k = jnp.maximum(s_k - s_prev, 0.0)   # cumulative count, bins 0..k
                s_prev = s_k
            else:
                cnbs_k = jnp.full_like(tpos, m_f)         # C_{nq-1} == 1 everywhere
            racc_k = jnp.clip(tpos + ck, 0.0, 1.0)        # cumulative recall (one-hot gt)
            rec_k = racc_k - racc_prev
            # precision <= 1 mathematically; the clamp guards bf16/f32 rounding edges
            prec_k = jnp.minimum(
                racc_k * pl.reciprocal(cnbs_k + 1e-16, approx=True), 1.0)
            num = num + prec_k * rec_k
            racc_prev = racc_k
        # ap = sum_k prec_k * rec_k / sum_k rec_k ; guarded denominator so queries
        # without an in-bounds target give 0 (masked out of the loss) instead of NaN.
        ap = num * pl.reciprocal(jnp.maximum(racc_prev, 1e-16), approx=True)
        ap_ref[...] = ap[None]


def pixel_ap(f1_cm, f2, tpos, *, tn=None, tc=None):
    """f1_cm: (B, C, M), f2: (B, M, C), tpos: (B, M) f32 -> per-query AP (B, M) f32."""
    B, C, M = f1_cm.shape
    if tn is None:
        tn = _pick_tile(M, _tn_prefs())          # 256 on v6e/v7x, 128 on <=v5
    if tc is None:
        tc = _pick_tile(M, (512, 256, 128, 64, 32, 16, 8))
    assert M % tn == 0 and M % tc == 0

    kernel = functools.partial(_pixel_ap_kernel, nq=NQ, m_total=M)
    ap = pl.pallas_call(
        kernel,
        out_shape=jax.ShapeDtypeStruct((B, 1, M), jnp.float32),
        grid_spec=pltpu.PrefetchScalarGridSpec(
            num_scalar_prefetch=0,
            grid=(B, M // tn, M // tc),
            in_specs=[
                pl.BlockSpec((1, 1, tn), lambda b, i, c: (b, 0, i)),   # target scores
                pl.BlockSpec((1, C, tn), lambda b, i, c: (b, 0, i)),   # f1 tile (C, tn)
                pl.BlockSpec((1, tc, C), lambda b, i, c: (b, c, 0)),   # f2 chunk
            ],
            out_specs=pl.BlockSpec((1, 1, tn), lambda b, i, c: (b, 0, i)),
            scratch_shapes=[pltpu.VMEM((NQ - 1, tn), jnp.float32)],    # S_k accumulator
        ),
        compiler_params=pltpu.CompilerParams(
            dimension_semantics=("parallel", "parallel", "arbitrary"),
        ),
    )(tpos.reshape(B, 1, M).astype(jnp.float32),
      f1_cm.astype(jnp.bfloat16),          # bf16 matmul inputs; AP math stays f32
      f2.astype(jnp.bfloat16))
    return ap[:, 0, :]                     # (B, M), lane-dense output


def full_sampler(descriptors, reliability, aflow):
    """Deterministic dense sampler (plain-JAX glue).

    Returns (f1_cm, f2, tpos, msk, qconf): scores are computed inside the Pallas
    kernel as f2 @ f1, and the ground truth is encoded as the per-query target
    score tpos (with -1.0 for out-of-bounds flow) instead of a dense one-hot.
    """
    # TODO(synk): the reference module takes an arbitrary external sampler; a
    # deterministic dense full-sampler (all pixels as queries and database) is used here.
    feat1, feat2 = descriptors
    B, C, H, W = feat1.shape
    M = H * W
    f1 = feat1 / (jnp.linalg.norm(feat1, axis=1, keepdims=True) + 1e-12)
    f2 = feat2 / (jnp.linalg.norm(feat2, axis=1, keepdims=True) + 1e-12)
    f1_cm = f1.reshape(B, C, M)                                   # (B, C, M), no transpose
    f2 = jnp.transpose(f2.reshape(B, C, M), (0, 2, 1))            # (B, M, C)

    # ground-truth correspondence from absolute flow: aflow[:,0]=x2, aflow[:,1]=y2
    x2 = jnp.round(aflow[:, 0]).astype(jnp.int32)                 # (B, H, W)
    y2 = jnp.round(aflow[:, 1]).astype(jnp.int32)
    inb = (x2 >= 0) & (x2 < W) & (y2 >= 0) & (y2 < H)
    tgt = jnp.where(inb, y2 * W + x2, 0).reshape(B, M)            # clamped index
    valid = inb.reshape(B, M)

    # Quantizer-domain score of each query at its target, computed once in XLA
    # glue (O(B*M*C) gather + dot) so the kernel never sees the one-hot labels.
    f2_tgt = jnp.take_along_axis(f2, tgt[:, :, None], axis=1)     # (B, M, C)
    cos = jnp.einsum("bcm,bmc->bm", f1_cm, f2_tgt)                # (B, M)
    tpos = jnp.where(valid, HALF_A * cos + HALF_A, -1.0).astype(jnp.float32)

    msk = inb
    if reliability is None:
        qconf = jnp.ones((B, H, W), jnp.float32)
    else:
        qconf = reliability[0].reshape(B, H, W)
    return f1_cm, f2, tpos, msk, qconf


def custom_pixel_ap_loss(descriptors, aflow, reliability=None):
    """Forward pass of CustomPixelAPLoss (loss_from_ap = 1 - ap; qconf unused, as in the spec)."""
    f1_cm, f2, tpos, msk, qconf = full_sampler(descriptors, reliability, aflow)
    n = qconf.size
    if n == 0:
        return jnp.float32(0.0)
    ap = pixel_ap(f1_cm, f2, tpos)            # (B, M)
    ap = ap.reshape(msk.shape)                # (B, H, W)
    pixel_loss = 1.0 - ap
    # loss = pixel_loss[msk].mean()  (boolean indexing -> masked mean)
    msk_f = msk.astype(jnp.float32)
    loss = jnp.sum(jnp.where(msk, pixel_loss, 0.0)) / jnp.maximum(jnp.sum(msk_f), 1.0)
    return loss


def _reference_loss(descriptors, aflow, nq=NQ):
    """Pure-JAX mirror of the PyTorch APLoss(nq, min=0, max=1) pipeline (O(M^2), test only)."""
    feat1, feat2 = descriptors
    B, C, H, W = feat1.shape
    M = H * W
    f1 = feat1 / (jnp.linalg.norm(feat1, axis=1, keepdims=True) + 1e-12)
    f2 = feat2 / (jnp.linalg.norm(feat2, axis=1, keepdims=True) + 1e-12)
    f1 = jnp.transpose(f1.reshape(B, C, M), (0, 2, 1))
    f2 = jnp.transpose(f2.reshape(B, C, M), (0, 2, 1))
    x = 0.5 * (jnp.einsum("bqc,bmc->bqm", f1, f2) + 1.0)          # scores mapped to [0,1]

    x2 = jnp.round(aflow[:, 0]).astype(jnp.int32)
    y2 = jnp.round(aflow[:, 1]).astype(jnp.int32)
    inb = (x2 >= 0) & (x2 < W) & (y2 >= 0) & (y2 < H)
    tgt = jnp.where(inb, y2 * W + x2, -1).reshape(B, M)
    label = (jnp.arange(M)[None, None, :] == tgt[:, :, None]).astype(jnp.float32)

    a = float(nq - 1)
    k = jnp.arange(nq, dtype=jnp.float32)
    q1 = -a * x[:, :, None, :] + (nq - k)[None, None, :, None]
    q2 = a * x[:, :, None, :] + (k + 2.0 - nq)[None, None, :, None]
    hats = jnp.maximum(jnp.minimum(q1, q2), 0.0)                  # (B, M, nq, M)
    nbs = hats.sum(axis=-1)
    rec = (hats * label[:, :, None, :]).sum(axis=-1)
    prec = jnp.cumsum(rec, axis=-1) / (1e-16 + jnp.cumsum(nbs, axis=-1))
    rec_n = rec / jnp.maximum(rec.sum(axis=-1, keepdims=True), 1e-16)
    ap = (prec * rec_n).sum(axis=-1)
    pixel_loss = 1.0 - ap
    msk = inb.reshape(B, M)
    return jnp.sum(jnp.where(msk, pixel_loss, 0.0)) / jnp.maximum(
        jnp.sum(msk.astype(jnp.float32)), 1.0)


if __name__ == "__main__":
    key = jax.random.PRNGKey(0)
    B, C, H, W = 2, 16, 8, 8
    k1, k2, k3 = jax.random.split(key, 3)
    feat1 = jax.random.normal(k1, (B, C, H, W), jnp.float32)
    feat2 = jax.random.normal(k2, (B, C, H, W), jnp.float32)

    # absolute flow: identity grid + small integer jitter (some pixels flow
    # out of bounds -> exercised by msk / tpos == -1)
    ys, xs = jnp.meshgrid(jnp.arange(H), jnp.arange(W), indexing="ij")
    base = jnp.stack([xs, ys], axis=0).astype(jnp.float32)[None]        # (1,2,H,W)
    jit = jax.random.randint(k3, (B, 2, H, W), -2, 3).astype(jnp.float32)
    aflow = base + jit                                                   # (B,2,H,W)

    loss = jax.jit(custom_pixel_ap_loss)((feat1, feat2), aflow)
    loss = jax.block_until_ready(loss)
    assert jnp.isfinite(loss), loss

    # sanity-check against a pure-JAX mirror of the PyTorch APLoss pipeline
    ref = _reference_loss((feat1, feat2), aflow)
    assert jnp.isfinite(ref), ref
    assert abs(float(loss) - float(ref)) < 5e-2, (float(loss), float(ref))
    print("KERNEL_OK")
</pallas_src>

<mosaic_0001>
module attributes {stable_mosaic.version = 11 : i64} {
  func.func @_pixel_ap_kernel(%arg0: i32, %arg1: i32, %arg2: i32, %arg3: memref<1x1x64xf32, #tpu.memory_space<vmem>>, %arg4: memref<1x16x64xbf16, #tpu.memory_space<vmem>>, %arg5: memref<1x64x16xbf16, #tpu.memory_space<vmem>>, %arg6: memref<1x1x64xf32, #tpu.memory_space<vmem>>, %arg7: memref<19x64xf32, #tpu.memory_space<vmem>>) attributes {dimension_semantics = [#tpu.dimension_semantics<parallel>, #tpu.dimension_semantics<parallel>, #tpu.dimension_semantics<arbitrary>], iteration_bounds = array<i64: 2, 1, 1>, scalar_prefetch = 0 : i64, scratch_operands = 1 : i64, tpu.core_type = #tpu.core_type<tc>, window_params = [{transform_indices = @transform_0, window_bounds = array<i64: 1, 1, 64>}, {transform_indices = @transform_1, window_bounds = array<i64: 1, 16, 64>}, {transform_indices = @transform_2, window_bounds = array<i64: 1, 64, 16>}, {transform_indices = @transform_3, window_bounds = array<i64: 1, 1, 64>}]} {
    %c0_i32 = arith.constant 0 : i32
    %0 = arith.cmpi eq, %arg2, %c0_i32 : i32
    %1 = arith.extui %0 : i1 to i32
    %c0_i32_0 = arith.constant 0 : i32
    %2 = arith.cmpi ne, %1, %c0_i32_0 : i32
    scf.if %2 {
      %cst_72 = arith.constant 0.000000e+00 : f32
      %118 = vector.broadcast %cst_72 : f32 to vector<19x64xf32>
      %c0_73 = arith.constant 0 : index
      %c0_74 = arith.constant 0 : index
      %119 = vector.load %arg7[%c0_73, %c0_74] : memref<19x64xf32, #tpu.memory_space<vmem>>, vector<19x64xf32>
      tpu.vector_store %arg7[%c0_73, %c0_74], %118 {strides = array<i32>} : memref<19x64xf32, #tpu.memory_space<vmem>>, vector<19x64xf32>,
    } else {
    }
    %c0 = arith.constant 0 : index
    %c0_1 = arith.constant 0 : index
    %c0_2 = arith.constant 0 : index
    %3 = vector.load %arg4[%c0, %c0_1, %c0_2] : memref<1x16x64xbf16, #tpu.memory_space<vmem>>, vector<1x16x64xbf16>
    %4 = vector.shape_cast %3 : vector<1x16x64xbf16> to vector<16x64xbf16>
    %c0_3 = arith.constant 0 : index
    %c0_4 = arith.constant 0 : index
    %c0_5 = arith.constant 0 : index
    %5 = vector.load %arg5[%c0_3, %c0_4, %c0_5] : memref<1x64x16xbf16, #tpu.memory_space<vmem>>, vector<1x64x16xbf16>
    %6 = vector.shape_cast %5 : vector<1x64x16xbf16> to vector<64x16xbf16>
    %cst = arith.constant dense<0.000000e+00> : vector<64x64xf32>
    %7 = tpu.matmul %6, %4, %cst {dimension_numbers = #tpu.dot_dimension_numbers<[1], [0], [0], [1], [0, 0, 1, 1], [], []>} : vector<64x16xbf16>, vector<16x64xbf16>, vector<64x64xf32> -> vector<64x64xf32>
    %cst_6 = arith.constant 9.500000e+00 : f32
    %8 = vector.broadcast %cst_6 : f32 to vector<64x64xf32>
    %9 = arith.mulf %8, %7 : vector<64x64xf32>
    %cst_7 = arith.constant 9.500000e+00 : f32
    %10 = vector.broadcast %cst_7 : f32 to vector<64x64xf32>
    %11 = arith.addf %9, %10 : vector<64x64xf32>
    %12 = arith.truncf %11 : vector<64x64xf32> to vector<64x64xbf16>
    %cst_8 = arith.constant 1.000000e+00 : bf16
    %13 = vector.broadcast %cst_8 : bf16 to vector<1x64xbf16>
    %cst_9 = arith.constant 1.800000e+01 : bf16
    %14 = vector.broadcast %cst_9 : bf16 to vector<64x64xbf16>
    %15 = arith.maximumf %12, %14 : vector<64x64xbf16>
    %cst_10 = arith.constant dense<0.000000e+00> : vector<1x64xf32>
    %16 = tpu.matmul %13, %15, %cst_10 {dimension_numbers = #tpu.dot_dimension_numbers<[1], [0], [0], [1], [0, 0, 1, 1], [], []>} : vector<1x64xbf16>, vector<64x64xbf16>, vector<1x64xf32> -> vector<1x64xf32>
    %cst_11 = arith.constant -1.152000e+03 : f32
    %17 = vector.broadcast %cst_11 : f32 to vector<1x64xf32>
    %18 = arith.addf %16, %17 : vector<1x64xf32>
    %cst_12 = arith.constant 1.700000e+01 : bf16
    %19 = vector.broadcast %cst_12 : bf16 to vector<64x64xbf16>
    %20 = arith.maximumf %12, %19 : vector<64x64xbf16>
    %cst_13 = arith.constant dense<0.000000e+00> : vector<1x64xf32>
    %21 = tpu.matmul %13, %20, %cst_13 {dimension_numbers = #tpu.dot_dimension_numbers<[1], [0], [0], [1], [0, 0, 1, 1], [], []>} : vector<1x64xbf16>, vector<64x64xbf16>, vector<1x64xf32> -> vector<1x64xf32>
    %cst_14 = arith.constant -1.088000e+03 : f32
    %22 = vector.broadcast %cst_14 : f32 to vector<1x64xf32>
    %23 = arith.addf %21, %22 : vector<1x64xf32>
    %cst_15 = arith.constant 1.600000e+01 : bf16
    %24 = vector.broadcast %cst_15 : bf16 to vector<64x64xbf16>
    %25 = arith.maximumf %12, %24 : vector<64x64xbf16>
    %cst_16 = arith.constant dense<0.000000e+00> : vector<1x64xf32>
    %26 = tpu.matmul %13, %25, %cst_16 {dimension_numbers = #tpu.dot_dimension_numbers<[1], [0], [0], [1], [0, 0, 1, 1], [], []>} : vector<1x64xbf16>, vector<64x64xbf16>, vector<1x64xf32> -> vector<1x64xf32>
    %cst_17 = arith.constant -1.024000e+03 : f32
    %27 = vector.broadcast %cst_17 : f32 to vector<1x64xf32>
    %28 = arith.addf %26, %27 : vector<1x64xf32>
    %cst_18 = arith.constant 1.500000e+01 : bf16
    %29 = vector.broadcast %cst_18 : bf16 to vector<64x64xbf16>
    %30 = arith.maximumf %12, %29 : vector<64x64xbf16>
    %cst_19 = arith.constant dense<0.000000e+00> : vector<1x64xf32>
    %31 = tpu.matmul %13, %30, %cst_19 {dimension_numbers = #tpu.dot_dimension_numbers<[1], [0], [0], [1], [0, 0, 1, 1], [], []>} : vector<1x64xbf16>, vector<64x64xbf16>, vector<1x64xf32> -> vector<1x64xf32>
    %cst_20 = arith.constant -9.600000e+02 : f32
    %32 = vector.broadcast %cst_20 : f32 to vector<1x64xf32>
    %33 = arith.addf %31, %32 : vector<1x64xf32>
    %cst_21 = arith.constant 1.400000e+01 : bf16
    %34 = vector.broadcast %cst_21 : bf16 to vector<64x64xbf16>
    %35 = arith.maximumf %12, %34 : vector<64x64xbf16>
    %cst_22 = arith.constant dense<0.000000e+00> : vector<1x64xf32>
    %36 = tpu.matmul %13, %35, %cst_22 {dimension_numbers = #tpu.dot_dimension_numbers<[1], [0], [0], [1], [0, 0, 1, 1], [], []>} : vector<1x64xbf16>, vector<64x64xbf16>, vector<1x64xf32> -> vector<1x64xf32>
    %cst_23 = arith.constant -8.960000e+02 : f32
    %37 = vector.broadcast %cst_23 : f32 to vector<1x64xf32>
    %38 = arith.addf %36, %37 : vector<1x64xf32>
    %cst_24 = arith.constant 1.300000e+01 : bf16
    %39 = vector.broadcast %cst_24 : bf16 to vector<64x64xbf16>
    %40 = arith.maximumf %12, %39 : vector<64x64xbf16>
    %cst_25 = arith.constant dense<0.000000e+00> : vector<1x64xf32>
    %41 = tpu.matmul %13, %40, %cst_25 {dimension_numbers = #tpu.dot_dimension_numbers<[1], [0], [0], [1], [0, 0, 1, 1], [], []>} : vector<1x64xbf16>, vector<64x64xbf16>, vector<1x64xf32> -> vector<1x64xf32>
    %cst_26 = arith.constant -8.320000e+02 : f32
    %42 = vector.broadcast %cst_26 : f32 to vector<1x64xf32>
    %43 = arith.addf %41, %42 : vector<1x64xf32>
    %cst_27 = arith.constant 1.200000e+01 : bf16
    %44 = vector.broadcast %cst_27 : bf16 to vector<64x64xbf16>
    %45 = arith.maximumf %12, %44 : vector<64x64xbf16>
    %cst_28 = arith.constant dense<0.000000e+00> : vector<1x64xf32>
    %46 = tpu.matmul %13, %45, %cst_28 {dimension_numbers = #tpu.dot_dimension_numbers<[1], [0], [0], [1], [0, 0, 1, 1], [], []>} : vector<1x64xbf16>, vector<64x64xbf16>, vector<1x64xf32> -> vector<1x64xf32>
    %cst_29 = arith.constant -7.680000e+02 : f32
    %47 = vector.broadcast %cst_29 : f32 to vector<1x64xf32>
    %48 = arith.addf %46, %47 : vector<1x64xf32>
    %cst_30 = arith.constant 1.100000e+01 : bf16
    %49 = vector.broadcast %cst_30 : bf16 to vector<64x64xbf16>
    %50 = arith.maximumf %12, %49 : vector<64x64xbf16>
    %cst_31 = arith.constant dense<0.000000e+00> : vector<1x64xf32>
    %51 = tpu.matmul %13, %50, %cst_31 {dimension_numbers = #tpu.dot_dimension_numbers<[1], [0], [0], [1], [0, 0, 1, 1], [], []>} : vector<1x64xbf16>, vector<64x64xbf16>, vector<1x64xf32> -> vector<1x64xf32>
    %cst_32 = arith.constant -7.040000e+02 : f32
    %52 = vector.broadcast %cst_32 : f32 to vector<1x64xf32>
    %53 = arith.addf %51, %52 : vector<1x64xf32>
    %cst_33 = arith.constant 1.000000e+01 : bf16
    %54 = vector.broadcast %cst_33 : bf16 to vector<64x64xbf16>
    %55 = arith.maximumf %12, %54 : vector<64x64xbf16>
    %cst_34 = arith.constant dense<0.000000e+00> : vector<1x64xf32>
    %56 = tpu.matmul %13, %55, %cst_34 {dimension_numbers = #tpu.dot_dimension_numbers<[1], [0], [0], [1], [0, 0, 1, 1], [], []>} : vector<1x64xbf16>, vector<64x64xbf16>, vector<1x64xf32> -> vector<1x64xf32>
    %cst_35 = arith.constant -6.400000e+02 : f32
    %57 = vector.broadcast %cst_35 : f32 to vector<1x64xf32>
    %58 = arith.addf %56, %57 : vector<1x64xf32>
    %cst_36 = arith.constant 9.000000e+00 : bf16
    %59 = vector.broadcast %cst_36 : bf16 to vector<64x64xbf16>
    %60 = arith.maximumf %12, %59 : vector<64x64xbf16>
    %cst_37 = arith.constant dense<0.000000e+00> : vector<1x64xf32>
    %61 = tpu.matmul %13, %60, %cst_37 {dimension_numbers = #tpu.dot_dimension_numbers<[1], [0], [0], [1], [0, 0, 1, 1], [], []>} : vector<1x64xbf16>, vector<64x64xbf16>, vector<1x64xf32> -> vector<1x64xf32>
    %cst_38 = arith.constant -5.760000e+02 : f32
    %62 = vector.broadcast %cst_38 : f32 to vector<1x64xf32>
    %63 = arith.addf %61, %62 : vector<1x64xf32>
    %cst_39 = arith.constant 8.000000e+00 : bf16
    %64 = vector.broadcast %cst_39 : bf16 to vector<64x64xbf16>
    %65 = arith.maximumf %12, %64 : vector<64x64xbf16>
    %cst_40 = arith.constant dense<0.000000e+00> : vector<1x64xf32>
    %66 = tpu.matmul %13, %65, %cst_40 {dimension_numbers = #tpu.dot_dimension_numbers<[1], [0], [0], [1], [0, 0, 1, 1], [], []>} : vector<1x64xbf16>, vector<64x64xbf16>, vector<1x64xf32> -> vector<1x64xf32>
    %cst_41 = arith.constant -5.120000e+02 : f32
    %67 = vector.broadcast %cst_41 : f32 to vector<1x64xf32>
    %68 = arith.addf %66, %67 : vector<1x64xf32>
    %cst_42 = arith.constant 7.000000e+00 : bf16
    %69 = vector.broadcast %cst_42 : bf16 to vector<64x64xbf16>
    %70 = arith.maximumf %12, %69 : vector<64x64xbf16>
    %cst_43 = arith.constant dense<0.000000e+00> : vector<1x64xf32>
    %71 = tpu.matmul %13, %70, %cst_43 {dimension_numbers = #tpu.dot_dimension_numbers<[1], [0], [0], [1], [0, 0, 1, 1], [], []>} : vector<1x64xbf16>, vector<64x64xbf16>, vector<1x64xf32> -> vector<1x64xf32>
    %cst_44 = arith.constant -4.480000e+02 : f32
    %72 = vector.broadcast %cst_44 : f32 to vector<1x64xf32>
    %73 = arith.addf %71, %72 : vector<1x64xf32>
    %cst_45 = arith.constant 6.000000e+00 : bf16
    %74 = vector.broadcast %cst_45 : bf16 to vector<64x64xbf16>
    %75 = arith.maximumf %12, %74 : vector<64x64xbf16>
    %cst_46 = arith.constant dense<0.000000e+00> : vector<1x64xf32>
    %76 = tpu.matmul %13, %75, %cst_46 {dimension_numbers = #tpu.dot_dimension_numbers<[1], [0], [0], [1], [0, 0, 1, 1], [], []>} : vector<1x64xbf16>, vector<64x64xbf16>, vector<1x64xf32> -> vector<1x64xf32>
    %cst_47 = arith.constant -3.840000e+02 : f32
    %77 = vector.broadcast %cst_47 : f32 to vector<1x64xf32>
    %78 = arith.addf %76, %77 : vector<1x64xf32>
    %cst_48 = arith.constant 5.000000e+00 : bf16
    %79 = vector.broadcast %cst_48 : bf16 to vector<64x64xbf16>
    %80 = arith.maximumf %12, %79 : vector<64x64xbf16>
    %cst_49 = arith.constant dense<0.000000e+00> : vector<1x64xf32>
    %81 = tpu.matmul %13, %80, %cst_49 {dimension_numbers = #tpu.dot_dimension_numbers<[1], [0], [0], [1], [0, 0, 1, 1], [], []>} : vector<1x64xbf16>, vector<64x64xbf16>, vector<1x64xf32> -> vector<1x64xf32>
    %cst_50 = arith.constant -3.200000e+02 : f32
    %82 = vector.broadcast %cst_50 : f32 to vector<1x64xf32>
    %83 = arith.addf %81, %82 : vector<1x64xf32>
    %cst_51 = arith.constant 4.000000e+00 : bf16
    %84 = vector.broadcast %cst_51 : bf16 to vector<64x64xbf16>
    %85 = arith.maximumf %12, %84 : vector<64x64xbf16>
    %cst_52 = arith.constant dense<0.000000e+00> : vector<1x64xf32>
    %86 = tpu.matmul %13, %85, %cst_52 {dimension_numbers = #tpu.dot_dimension_numbers<[1], [0], [0], [1], [0, 0, 1, 1], [], []>} : vector<1x64xbf16>, vector<64x64xbf16>, vector<1x64xf32> -> vector<1x64xf32>
    %cst_53 = arith.constant -2.560000e+02 : f32
    %87 = vector.broadcast %cst_53 : f32 to vector<1x64xf32>
    %88 = arith.addf %86, %87 : vector<1x64xf32>
    %cst_54 = arith.constant 3.000000e+00 : bf16
    %89 = vector.broadcast %cst_54 : bf16 to vector<64x64xbf16>
    %90 = arith.maximumf %12, %89 : vector<64x64xbf16>
    %cst_55 = arith.constant dense<0.000000e+00> : vector<1x64xf32>
    %91 = tpu.matmul %13, %90, %cst_55 {dimension_numbers = #tpu.dot_dimension_numbers<[1], [0], [0], [1], [0, 0, 1, 1], [], []>} : vector<1x64xbf16>, vector<64x64xbf16>, vector<1x64xf32> -> vector<1x64xf32>
    %cst_56 = arith.constant -1.920000e+02 : f32
    %92 = vector.broadcast %cst_56 : f32 to vector<1x64xf32>
    %93 = arith.addf %91, %92 : vector<1x64xf32>
    %cst_57 = arith.constant 2.000000e+00 : bf16
    %94 = vector.broadcast %cst_57 : bf16 to vector<64x64xbf16>
    %95 = arith.maximumf %12, %94 : vector<64x64xbf16>
    %cst_58 = arith.constant dense<0.000000e+00> : vector<1x64xf32>
    %96 = tpu.matmul %13, %95, %cst_58 {dimension_numbers = #tpu.dot_dimension_numbers<[1], [0], [0], [1], [0, 0, 1, 1], [], []>} : vector<1x64xbf16>, vector<64x64xbf16>, vector<1x64xf32> -> vector<1x64xf32>
    %cst_59 = arith.constant -1.280000e+02 : f32
    %97 = vector.broadcast %cst_59 : f32 to vector<1x64xf32>
    %98 = arith.addf %96, %97 : vector<1x64xf32>
    %cst_60 = arith.constant 1.000000e+00 : bf16
    %99 = vector.broadcast %cst_60 : bf16 to vector<64x64xbf16>
    %100 = arith.maximumf %12, %99 : vector<64x64xbf16>
    %cst_61 = arith.constant dense<0.000000e+00> : vector<1x64xf32>
    %101 = tpu.matmul %13, %100, %cst_61 {dimension_numbers = #tpu.dot_dimension_numbers<[1], [0], [0], [1], [0, 0, 1, 1], [], []>} : vector<1x64xbf16>, vector<64x64xbf16>, vector<1x64xf32> -> vector<1x64xf32>
    %cst_62 = arith.constant -6.400000e+01 : f32
    %102 = vector.broadcast %cst_62 : f32 to vector<1x64xf32>
    %103 = arith.addf %101, %102 : vector<1x64xf32>
    %cst_63 = arith.constant 0.000000e+00 : bf16
    %104 = vector.broadcast %cst_63 : bf16 to vector<64x64xbf16>
    %105 = arith.maximumf %12, %104 : vector<64x64xbf16>
    %cst_64 = arith.constant dense<0.000000e+00> : vector<1x64xf32>
    %106 = tpu.matmul %13, %105, %cst_64 {dimension_numbers = #tpu.dot_dimension_numbers<[1], [0], [0], [1], [0, 0, 1, 1], [], []>} : vector<1x64xbf16>, vector<64x64xbf16>, vector<1x64xf32> -> vector<1x64xf32>
    %cst_65 = arith.constant 0.000000e+00 : f32
    %107 = vector.broadcast %cst_65 : f32 to vector<1x64xf32>
    %108 = arith.addf %106, %107 : vector<1x64xf32>
    %c0_66 = arith.constant 0 : index
    %c0_67 = arith.constant 0 : index
    %109 = vector.load %arg7[%c0_66, %c0_67] : memref<19x64xf32, #tpu.memory_space<vmem>>, vector<19x64xf32>
    %110 = tpu.concatenate %18, %23, %28, %33, %38, %43, %48, %53, %58, %63, %68, %73, %78, %83, %88, %93 in 0 : vector<1x64xf32>, vector<1x64xf32>, vector<1x64xf32>, vector<1x64xf32>, vector<1x64xf32>, vector<1x64xf32>, vector<1x64xf32>, vector<1x64xf32>, vector<1x64xf32>, vector<1x64xf32>, vector<1x64xf32>, vector<1x64xf32>, vector<1x64xf32>, vector<1x64xf32>, vector<1x64xf32>, vector<1x64xf32> -> vector<16x64xf32>
    %111 = tpu.concatenate %98, %103, %108 in 0 : vector<1x64xf32>, vector<1x64xf32>, vector<1x64xf32> -> vector<3x64xf32>
    %112 = tpu.concatenate %110, %111 in 0 : vector<16x64xf32>, vector<3x64xf32> -> vector<19x64xf32>
    %113 = arith.addf %109, %112 : vector<19x64xf32>
    %c0_68 = arith.constant 0 : index
    %c0_69 = arith.constant 0 : index
    %114 = vector.load %arg7[%c0_68, %c0_69] : memref<19x64xf32, #tpu.memory_space<vmem>>, vector<19x64xf32>
    tpu.vector_store %arg7[%c0_68, %c0_69], %113 {strides = array<i32>} : memref<19x64xf32, #tpu.memory_space<vmem>>, vector<19x64xf32>,
    %c0_i32_70 = arith.constant 0 : i32
    %115 = arith.cmpi eq, %arg2, %c0_i32_70 : i32
    %116 = arith.extui %115 : i1 to i32
    %c0_i32_71 = arith.constant 0 : i32
    %117 = arith.cmpi ne, %116, %c0_i32_71 : i32
    scf.if %117 {
      %c0_72 = arith.constant 0 : index
      %c0_73 = arith.constant 0 : index
      %c0_74 = arith.constant 0 : index
      %118 = vector.load %arg3[%c0_72, %c0_73, %c0_74] : memref<1x1x64xf32, #tpu.memory_space<vmem>>, vector<1x1x64xf32>
      %119 = vector.shape_cast %118 : vector<1x1x64xf32> to vector<1x64xf32>
      %c0_75 = arith.constant 0 : index
      %c0_76 = arith.constant 0 : index
      %120 = vector.load %arg7[%c0_75, %c0_76] : memref<19x64xf32, #tpu.memory_space<vmem>>, vector<19x64xf32>
      %cst_77 = arith.constant 0.000000e+00 : f32
      %121 = vector.broadcast %cst_77 : f32 to vector<1x64xf32>
      %cst_78 = arith.constant 0.000000e+00 : f32
      %122 = vector.broadcast %cst_78 : f32 to vector<1x64xf32>
      %cst_79 = arith.constant 0.000000e+00 : f32
      %123 = vector.broadcast %cst_79 : f32 to vector<1x64xf32>
      %124 = vector.extract_strided_slice %120 {offsets = [0, 0], sizes = [1, 64], strides = [1, 1]} : vector<19x64xf32> to vector<1x64xf32>
      %125 = arith.subf %124, %122 : vector<1x64xf32>
      %cst_80 = arith.constant 0.000000e+00 : f32
      %126 = vector.broadcast %cst_80 : f32 to vector<1x64xf32>
      %127 = arith.maximumf %125, %126 : vector<1x64xf32>
      %cst_81 = arith.constant -1.800000e+01 : f32
      %128 = vector.broadcast %cst_81 : f32 to vector<1x64xf32>
      %129 = arith.addf %119, %128 : vector<1x64xf32>
      %cst_82 = arith.constant 0.000000e+00 : f32
      %cst_83 = arith.constant 1.000000e+00 : f32
      %130 = vector.broadcast %cst_82 : f32 to vector<1x64xf32>
      %131 = arith.maximumf %130, %129 : vector<1x64xf32>
      %132 = vector.broadcast %cst_83 : f32 to vector<1x64xf32>
      %133 = arith.minimumf %132, %131 : vector<1x64xf32>
      %134 = arith.subf %133, %121 : vector<1x64xf32>
      %cst_84 = arith.constant 1.000000e-16 : f32
      %135 = vector.broadcast %cst_84 : f32 to vector<1x64xf32>
      %136 = arith.addf %127, %135 : vector<1x64xf32>
      %137 = tpu.reciprocal %136 {approx = true} : vector<1x64xf32> -> vector<1x64xf32>
      %138 = arith.mulf %133, %137 : vector<1x64xf32>
      %cst_85 = arith.constant 1.000000e+00 : f32
      %139 = vector.broadcast %cst_85 : f32 to vector<1x64xf32>
      %140 = arith.minimumf %138, %139 : vector<1x64xf32>
      %141 = arith.mulf %140, %134 : vector<1x64xf32>
      %142 = arith.addf %123, %141 : vector<1x64xf32>
      %143 = vector.extract_strided_slice %120 {offsets = [1, 0], sizes = [1, 64], strides = [1, 1]} : vector<19x64xf32> to vector<1x64xf32>
      %144 = arith.subf %143, %124 : vector<1x64xf32>
      %cst_86 = arith.constant 0.000000e+00 : f32
      %145 = vector.broadcast %cst_86 : f32 to vector<1x64xf32>
      %146 = arith.maximumf %144, %145 : vector<1x64xf32>
      %cst_87 = arith.constant -1.700000e+01 : f32
      %147 = vector.broadcast %cst_87 : f32 to vector<1x64xf32>
      %148 = arith.addf %119, %147 : vector<1x64xf32>
      %cst_88 = arith.constant 0.000000e+00 : f32
      %cst_89 = arith.constant 1.000000e+00 : f32
      %149 = vector.broadcast %cst_88 : f32 to vector<1x64xf32>
      %150 = arith.maximumf %149, %148 : vector<1x64xf32>
      %151 = vector.broadcast %cst_89 : f32 to vector<1x64xf32>
      %152 = arith.minimumf %151, %150 : vector<1x64xf32>
      %153 = arith.subf %152, %133 : vector<1x64xf32>
      %cst_90 = arith.constant 1.000000e-16 : f32
      %154 = vector.broadcast %cst_90 : f32 to vector<1x64xf32>
      %155 = arith.addf %146, %154 : vector<1x64xf32>
      %156 = tpu.reciprocal %155 {approx = true} : vector<1x64xf32> -> vector<1x64xf32>
      %157 = arith.mulf %152, %156 : vector<1x64xf32>
      %cst_91 = arith.constant 1.000000e+00 : f32
      %158 = vector.broadcast %cst_91 : f32 to vector<1x64xf32>
      %159 = arith.minimumf %157, %158 : vector<1x64xf32>
      %160 = arith.mulf %159, %153 : vector<1x64xf32>
      %161 = arith.addf %142, %160 : vector<1x64xf32>
      %162 = vector.extract_strided_slice %120 {offsets = [2, 0], sizes = [1, 64], strides = [1, 1]} : vector<19x64xf32> to vector<1x64xf32>
      %163 = arith.subf %162, %143 : vector<1x64xf32>
      %cst_92 = arith.constant 0.000000e+00 : f32
      %164 = vector.broadcast %cst_92 : f32 to vector<1x64xf32>
      %165 = arith.maximumf %163, %164 : vector<1x64xf32>
      %cst_93 = arith.constant -1.600000e+01 : f32
      %166 = vector.broadcast %cst_93 : f32 to vector<1x64xf32>
      %167 = arith.addf %119, %166 : vector<1x64xf32>
      %cst_94 = arith.constant 0.000000e+00 : f32
      %cst_95 = arith.constant 1.000000e+00 : f32
      %168 = vector.broadcast %cst_94 : f32 to vector<1x64xf32>
      %169 = arith.maximumf %168, %167 : vector<1x64xf32>
      %170 = vector.broadcast %cst_95 : f32 to vector<1x64xf32>
      %171 = arith.minimumf %170, %169 : vector<1x64xf32>
      %172 = arith.subf %171, %152 : vector<1x64xf32>
      %cst_96 = arith.constant 1.000000e-16 : f32
      %173 = vector.broadcast %cst_96 : f32 to vector<1x64xf32>
      %174 = arith.addf %165, %173 : vector<1x64xf32>
      %175 = tpu.reciprocal %174 {approx = true} : vector<1x64xf32> -> vector<1x64xf32>
      %176 = arith.mulf %171, %175 : vector<1x64xf32>
      %cst_97 = arith.constant 1.000000e+00 : f32
      %177 = vector.broadcast %cst_97 : f32 to vector<1x64xf32>
      %178 = arith.minimumf %176, %177 : vector<1x64xf32>
      %179 = arith.mulf %178, %172 : vector<1x64xf32>
      %180 = arith.addf %161, %179 : vector<1x64xf32>
      %181 = vector.extract_strided_slice %120 {offsets = [3, 0], sizes = [1, 64], strides = [1, 1]} : vector<19x64xf32> to vector<1x64xf32>
      %182 = arith.subf %181, %162 : vector<1x64xf32>
      %cst_98 = arith.constant 0.000000e+00 : f32
      %183 = vector.broadcast %cst_98 : f32 to vector<1x64xf32>
      %184 = arith.maximumf %182, %183 : vector<1x64xf32>
      %cst_99 = arith.constant -1.500000e+01 : f32
      %185 = vector.broadcast %cst_99 : f32 to vector<1x64xf32>
      %186 = arith.addf %119, %185 : vector<1x64xf32>
      %cst_100 = arith.constant 0.000000e+00 : f32
      %cst_101 = arith.constant 1.000000e+00 : f32
      %187 = vector.broadcast %cst_100 : f32 to vector<1x64xf32>
      %188 = arith.maximumf %187, %186 : vector<1x64xf32>
      %189 = vector.broadcast %cst_101 : f32 to vector<1x64xf32>
      %190 = arith.minimumf %189, %188 : vector<1x64xf32>
      %191 = arith.subf %190, %171 : vector<1x64xf32>
      %cst_102 = arith.constant 1.000000e-16 : f32
      %192 = vector.broadcast %cst_102 : f32 to vector<1x64xf32>
      %193 = arith.addf %184, %192 : vector<1x64xf32>
      %194 = tpu.reciprocal %193 {approx = true} : vector<1x64xf32> -> vector<1x64xf32>
      %195 = arith.mulf %190, %194 : vector<1x64xf32>
      %cst_103 = arith.constant 1.000000e+00 : f32
      %196 = vector.broadcast %cst_103 : f32 to vector<1x64xf32>
      %197 = arith.minimumf %195, %196 : vector<1x64xf32>
      %198 = arith.mulf %197, %191 : vector<1x64xf32>
      %199 = arith.addf %180, %198 : vector<1x64xf32>
      %200 = vector.extract_strided_slice %120 {offsets = [4, 0], sizes = [1, 64], strides = [1, 1]} : vector<19x64xf32> to vector<1x64xf32>
      %201 = arith.subf %200, %181 : vector<1x64xf32>
      %cst_104 = arith.constant 0.000000e+00 : f32
      %202 = vector.broadcast %cst_104 : f32 to vector<1x64xf32>
      %203 = arith.maximumf %201, %202 : vector<1x64xf32>
      %cst_105 = arith.constant -1.400000e+01 : f32
      %204 = vector.broadcast %cst_105 : f32 to vector<1x64xf32>
      %205 = arith.addf %119, %204 : vector<1x64xf32>
      %cst_106 = arith.constant 0.000000e+00 : f32
      %cst_107 = arith.constant 1.000000e+00 : f32
      %206 = vector.broadcast %cst_106 : f32 to vector<1x64xf32>
      %207 = arith.maximumf %206, %205 : vector<1x64xf32>
      %208 = vector.broadcast %cst_107 : f32 to vector<1x64xf32>
      %209 = arith.minimumf %208, %207 : vector<1x64xf32>
      %210 = arith.subf %209, %190 : vector<1x64xf32>
      %cst_108 = arith.constant 1.000000e-16 : f32
      %211 = vector.broadcast %cst_108 : f32 to vector<1x64xf32>
      %212 = arith.addf %203, %211 : vector<1x64xf32>
      %213 = tpu.reciprocal %212 {approx = true} : vector<1x64xf32> -> vector<1x64xf32>
      %214 = arith.mulf %209, %213 : vector<1x64xf32>
      %cst_109 = arith.constant 1.000000e+00 : f32
      %215 = vector.broadcast %cst_109 : f32 to vector<1x64xf32>
      %216 = arith.minimumf %214, %215 : vector<1x64xf32>
      %217 = arith.mulf %216, %210 : vector<1x64xf32>
      %218 = arith.addf %199, %217 : vector<1x64xf32>
      %219 = vector.extract_strided_slice %120 {offsets = [5, 0], sizes = [1, 64], strides = [1, 1]} : vector<19x64xf32> to vector<1x64xf32>
      %220 = arith.subf %219, %200 : vector<1x64xf32>
      %cst_110 = arith.constant 0.000000e+00 : f32
      %221 = vector.broadcast %cst_110 : f32 to vector<1x64xf32>
      %222 = arith.maximumf %220, %221 : vector<1x64xf32>
      %cst_111 = arith.constant -1.300000e+01 : f32
      %223 = vector.broadcast %cst_111 : f32 to vector<1x64xf32>
      %224 = arith.addf %119, %223 : vector<1x64xf32>
      %cst_112 = arith.constant 0.000000e+00 : f32
      %cst_113 = arith.constant 1.000000e+00 : f32
      %225 = vector.broadcast %cst_112 : f32 to vector<1x64xf32>
      %226 = arith.maximumf %225, %224 : vector<1x64xf32>
      %227 = vector.broadcast %cst_113 : f32 to vector<1x64xf32>
      %228 = arith.minimumf %227, %226 : vector<1x64xf32>
      %229 = arith.subf %228, %209 : vector<1x64xf32>
      %cst_114 = arith.constant 1.000000e-16 : f32
      %230 = vector.broadcast %cst_114 : f32 to vector<1x64xf32>
      %231 = arith.addf %222, %230 : vector<1x64xf32>
      %232 = tpu.reciprocal %231 {approx = true} : vector<1x64xf32> -> vector<1x64xf32>
      %233 = arith.mulf %228, %232 : vector<1x64xf32>
      %cst_115 = arith.constant 1.000000e+00 : f32
      %234 = vector.broadcast %cst_115 : f32 to vector<1x64xf32>
      %235 = arith.minimumf %233, %234 : vector<1x64xf32>
      %236 = arith.mulf %235, %229 : vector<1x64xf32>
      %237 = arith.addf %218, %236 : vector<1x64xf32>
      %238 = vector.extract_strided_slice %120 {offsets = [6, 0], sizes = [1, 64], strides = [1, 1]} : vector<19x64xf32> to vector<1x64xf32>
      %239 = arith.subf %238, %219 : vector<1x64xf32>
      %cst_116 = arith.constant 0.000000e+00 : f32
      %240 = vector.broadcast %cst_116 : f32 to vector<1x64xf32>
      %241 = arith.maximumf %239, %240 : vector<1x64xf32>
      %cst_117 = arith.constant -1.200000e+01 : f32
      %242 = vector.broadcast %cst_117 : f32 to vector<1x64xf32>
      %243 = arith.addf %119, %242 : vector<1x64xf32>
      %cst_118 = arith.constant 0.000000e+00 : f32
      %cst_119 = arith.constant 1.000000e+00 : f32
      %244 = vector.broadcast %cst_118 : f32 to vector<1x64xf32>
      %245 = arith.maximumf %244, %243 : vector<1x64xf32>
      %246 = vector.broadcast %cst_119 : f32 to vector<1x64xf32>
      %247 = arith.minimumf %246, %245 : vector<1x64xf32>
      %248 = arith.subf %247, %228 : vector<1x64xf32>
      %cst_120 = arith.constant 1.000000e-16 : f32
      %249 = vector.broadcast %cst_120 : f32 to vector<1x64xf32>
      %250 = arith.addf %241, %249 : vector<1x64xf32>
      %251 = tpu.reciprocal %250 {approx = true} : vector<1x64xf32> -> vector<1x64xf32>
      %252 = arith.mulf %247, %251 : vector<1x64xf32>
      %cst_121 = arith.constant 1.000000e+00 : f32
      %253 = vector.broadcast %cst_121 : f32 to vector<1x64xf32>
      %254 = arith.minimumf %252, %253 : vector<1x64xf32>
      %255 = arith.mulf %254, %248 : vector<1x64xf32>
      %256 = arith.addf %237, %255 : vector<1x64xf32>
      %257 = vector.extract_strided_slice %120 {offsets = [7, 0], sizes = [1, 64], strides = [1, 1]} : vector<19x64xf32> to vector<1x64xf32>
      %258 = arith.subf %257, %238 : vector<1x64xf32>
      %cst_122 = arith.constant 0.000000e+00 : f32
      %259 = vector.broadcast %cst_122 : f32 to vector<1x64xf32>
      %260 = arith.maximumf %258, %259 : vector<1x64xf32>
      %cst_123 = arith.constant -1.100000e+01 : f32
      %261 = vector.broadcast %cst_123 : f32 to vector<1x64xf32>
      %262 = arith.addf %119, %261 : vector<1x64xf32>
      %cst_124 = arith.constant 0.000000e+00 : f32
      %cst_125 = arith.constant 1.000000e+00 : f32
      %263 = vector.broadcast %cst_124 : f32 to vector<1x64xf32>
      %264 = arith.maximumf %263, %262 : vector<1x64xf32>
      %265 = vector.broadcast %cst_125 : f32 to vector<1x64xf32>
      %266 = arith.minimumf %265, %264 : vector<1x64xf32>
      %267 = arith.subf %266, %247 : vector<1x64xf32>
      %cst_126 = arith.constant 1.000000e-16 : f32
      %268 = vector.broadcast %cst_126 : f32 to vector<1x64xf32>
      %269 = arith.addf %260, %268 : vector<1x64xf32>
      %270 = tpu.reciprocal %269 {approx = true} : vector<1x64xf32> -> vector<1x64xf32>
      %271 = arith.mulf %266, %270 : vector<1x64xf32>
      %cst_127 = arith.constant 1.000000e+00 : f32
      %272 = vector.broadcast %cst_127 : f32 to vector<1x64xf32>
      %273 = arith.minimumf %271, %272 : vector<1x64xf32>
      %274 = arith.mulf %273, %267 : vector<1x64xf32>
      %275 = arith.addf %256, %274 : vector<1x64xf32>
      %276 = vector.extract_strided_slice %120 {offsets = [8, 0], sizes = [1, 64], strides = [1, 1]} : vector<19x64xf32> to vector<1x64xf32>
      %277 = arith.subf %276, %257 : vector<1x64xf32>
      %cst_128 = arith.constant 0.000000e+00 : f32
      %278 = vector.broadcast %cst_128 : f32 to vector<1x64xf32>
      %279 = arith.maximumf %277, %278 : vector<1x64xf32>
      %cst_129 = arith.constant -1.000000e+01 : f32
      %280 = vector.broadcast %cst_129 : f32 to vector<1x64xf32>
      %281 = arith.addf %119, %280 : vector<1x64xf32>
      %cst_130 = arith.constant 0.000000e+00 : f32
      %cst_131 = arith.constant 1.000000e+00 : f32
      %282 = vector.broadcast %cst_130 : f32 to vector<1x64xf32>
      %283 = arith.maximumf %282, %281 : vector<1x64xf32>
      %284 = vector.broadcast %cst_131 : f32 to vector<1x64xf32>
      %285 = arith.minimumf %284, %283 : vector<1x64xf32>
      %286 = arith.subf %285, %266 : vector<1x64xf32>
      %cst_132 = arith.constant 1.000000e-16 : f32
      %287 = vector.broadcast %cst_132 : f32 to vector<1x64xf32>
      %288 = arith.addf %279, %287 : vector<1x64xf32>
      %289 = tpu.reciprocal %288 {approx = true} : vector<1x64xf32> -> vector<1x64xf32>
      %290 = arith.mulf %285, %289 : vector<1x64xf32>
      %cst_133 = arith.constant 1.000000e+00 : f32
      %291 = vector.broadcast %cst_133 : f32 to vector<1x64xf32>
      %292 = arith.minimumf %290, %291 : vector<1x64xf32>
      %293 = arith.mulf %292, %286 : vector<1x64xf32>
      %294 = arith.addf %275, %293 : vector<1x64xf32>
      %295 = vector.extract_strided_slice %120 {offsets = [9, 0], sizes = [1, 64], strides = [1, 1]} : vector<19x64xf32> to vector<1x64xf32>
      %296 = arith.subf %295, %276 : vector<1x64xf32>
      %cst_134 = arith.constant 0.000000e+00 : f32
      %297 = vector.broadcast %cst_134 : f32 to vector<1x64xf32>
      %298 = arith.maximumf %296, %297 : vector<1x64xf32>
      %cst_135 = arith.constant -9.000000e+00 : f32
      %299 = vector.broadcast %cst_135 : f32 to vector<1x64xf32>
      %300 = arith.addf %119, %299 : vector<1x64xf32>
      %cst_136 = arith.constant 0.000000e+00 : f32
      %cst_137 = arith.constant 1.000000e+00 : f32
      %301 = vector.broadcast %cst_136 : f32 to vector<1x64xf32>
      %302 = arith.maximumf %301, %300 : vector<1x64xf32>
      %303 = vector.broadcast %cst_137 : f32 to vector<1x64xf32>
      %304 = arith.minimumf %303, %302 : vector<1x64xf32>
      %305 = arith.subf %304, %285 : vector<1x64xf32>
      %cst_138 = arith.constant 1.000000e-16 : f32
      %306 = vector.broadcast %cst_138 : f32 to vector<1x64xf32>
      %307 = arith.addf %298, %306 : vector<1x64xf32>
      %308 = tpu.reciprocal %307 {approx = true} : vector<1x64xf32> -> vector<1x64xf32>
      %309 = arith.mulf %304, %308 : vector<1x64xf32>
      %cst_139 = arith.constant 1.000000e+00 : f32
      %310 = vector.broadcast %cst_139 : f32 to vector<1x64xf32>
      %311 = arith.minimumf %309, %310 : vector<1x64xf32>
      %312 = arith.mulf %311, %305 : vector<1x64xf32>
      %313 = arith.addf %294, %312 : vector<1x64xf32>
      %314 = vector.extract_strided_slice %120 {offsets = [10, 0], sizes = [1, 64], strides = [1, 1]} : vector<19x64xf32> to vector<1x64xf32>
      %315 = arith.subf %314, %295 : vector<1x64xf32>
      %cst_140 = arith.constant 0.000000e+00 : f32
      %316 = vector.broadcast %cst_140 : f32 to vector<1x64xf32>
      %317 = arith.maximumf %315, %316 : vector<1x64xf32>
      %cst_141 = arith.constant -8.000000e+00 : f32
      %318 = vector.broadcast %cst_141 : f32 to vector<1x64xf32>
      %319 = arith.addf %119, %318 : vector<1x64xf32>
      %cst_142 = arith.constant 0.000000e+00 : f32
      %cst_143 = arith.constant 1.000000e+00 : f32
      %320 = vector.broadcast %cst_142 : f32 to vector<1x64xf32>
      %321 = arith.maximumf %320, %319 : vector<1x64xf32>
      %322 = vector.broadcast %cst_143 : f32 to vector<1x64xf32>
      %323 = arith.minimumf %322, %321 : vector<1x64xf32>
      %324 = arith.subf %323, %304 : vector<1x64xf32>
      %cst_144 = arith.constant 1.000000e-16 : f32
      %325 = vector.broadcast %cst_144 : f32 to vector<1x64xf32>
      %326 = arith.addf %317, %325 : vector<1x64xf32>
      %327 = tpu.reciprocal %326 {approx = true} : vector<1x64xf32> -> vector<1x64xf32>
      %328 = arith.mulf %323, %327 : vector<1x64xf32>
      %cst_145 = arith.constant 1.000000e+00 : f32
      %329 = vector.broadcast %cst_145 : f32 to vector<1x64xf32>
      %330 = arith.minimumf %328, %329 : vector<1x64xf32>
      %331 = arith.mulf %330, %324 : vector<1x64xf32>
      %332 = arith.addf %313, %331 : vector<1x64xf32>
      %333 = vector.extract_strided_slice %120 {offsets = [11, 0], sizes = [1, 64], strides = [1, 1]} : vector<19x64xf32> to vector<1x64xf32>
      %334 = arith.subf %333, %314 : vector<1x64xf32>
      %cst_146 = arith.constant 0.000000e+00 : f32
      %335 = vector.broadcast %cst_146 : f32 to vector<1x64xf32>
      %336 = arith.maximumf %334, %335 : vector<1x64xf32>
      %cst_147 = arith.constant -7.000000e+00 : f32
      %337 = vector.broadcast %cst_147 : f32 to vector<1x64xf32>
      %338 = arith.addf %119, %337 : vector<1x64xf32>
      %cst_148 = arith.constant 0.000000e+00 : f32
      %cst_149 = arith.constant 1.000000e+00 : f32
      %339 = vector.broadcast %cst_148 : f32 to vector<1x64xf32>
      %340 = arith.maximumf %339, %338 : vector<1x64xf32>
      %341 = vector.broadcast %cst_149 : f32 to vector<1x64xf32>
      %342 = arith.minimumf %341, %340 : vector<1x64xf32>
      %343 = arith.subf %342, %323 : vector<1x64xf32>
      %cst_150 = arith.constant 1.000000e-16 : f32
      %344 = vector.broadcast %cst_150 : f32 to vector<1x64xf32>
      %345 = arith.addf %336, %344 : vector<1x64xf32>
      %346 = tpu.reciprocal %345 {approx = true} : vector<1x64xf32> -> vector<1x64xf32>
      %347 = arith.mulf %342, %346 : vector<1x64xf32>
      %cst_151 = arith.constant 1.000000e+00 : f32
      %348 = vector.broadcast %cst_151 : f32 to vector<1x64xf32>
      %349 = arith.minimumf %347, %348 : vector<1x64xf32>
      %350 = arith.mulf %349, %343 : vector<1x64xf32>
      %351 = arith.addf %332, %350 : vector<1x64xf32>
      %352 = vector.extract_strided_slice %120 {offsets = [12, 0], sizes = [1, 64], strides = [1, 1]} : vector<19x64xf32> to vector<1x64xf32>
      %353 = arith.subf %352, %333 : vector<1x64xf32>
      %cst_152 = arith.constant 0.000000e+00 : f32
      %354 = vector.broadcast %cst_152 : f32 to vector<1x64xf32>
      %355 = arith.maximumf %353, %354 : vector<1x64xf32>
      %cst_153 = arith.constant -6.000000e+00 : f32
      %356 = vector.broadcast %cst_153 : f32 to vector<1x64xf32>
      %357 = arith.addf %119, %356 : vector<1x64xf32>
      %cst_154 = arith.constant 0.000000e+00 : f32
      %cst_155 = arith.constant 1.000000e+00 : f32
      %358 = vector.broadcast %cst_154 : f32 to vector<1x64xf32>
      %359 = arith.maximumf %358, %357 : vector<1x64xf32>
      %360 = vector.broadcast %cst_155 : f32 to vector<1x64xf32>
      %361 = arith.minimumf %360, %359 : vector<1x64xf32>
      %362 = arith.subf %361, %342 : vector<1x64xf32>
      %cst_156 = arith.constant 1.000000e-16 : f32
      %363 = vector.broadcast %cst_156 : f32 to vector<1x64xf32>
      %364 = arith.addf %355, %363 : vector<1x64xf32>
      %365 = tpu.reciprocal %364 {approx = true} : vector<1x64xf32> -> vector<1x64xf32>
      %366 = arith.mulf %361, %365 : vector<1x64xf32>
      %cst_157 = arith.constant 1.000000e+00 : f32
      %367 = vector.broadcast %cst_157 : f32 to vector<1x64xf32>
      %368 = arith.minimumf %366, %367 : vector<1x64xf32>
      %369 = arith.mulf %368, %362 : vector<1x64xf32>
      %370 = arith.addf %351, %369 : vector<1x64xf32>
      %371 = vector.extract_strided_slice %120 {offsets = [13, 0], sizes = [1, 64], strides = [1, 1]} : vector<19x64xf32> to vector<1x64xf32>
      %372 = arith.subf %371, %352 : vector<1x64xf32>
      %cst_158 = arith.constant 0.000000e+00 : f32
      %373 = vector.broadcast %cst_158 : f32 to vector<1x64xf32>
      %374 = arith.maximumf %372, %373 : vector<1x64xf32>
      %cst_159 = arith.constant -5.000000e+00 : f32
      %375 = vector.broadcast %cst_159 : f32 to vector<1x64xf32>
      %376 = arith.addf %119, %375 : vector<1x64xf32>
      %cst_160 = arith.constant 0.000000e+00 : f32
      %cst_161 = arith.constant 1.000000e+00 : f32
      %377 = vector.broadcast %cst_160 : f32 to vector<1x64xf32>
      %378 = arith.maximumf %377, %376 : vector<1x64xf32>
      %379 = vector.broadcast %cst_161 : f32 to vector<1x64xf32>
      %380 = arith.minimumf %379, %378 : vector<1x64xf32>
      %381 = arith.subf %380, %361 : vector<1x64xf32>
      %cst_162 = arith.constant 1.000000e-16 : f32
      %382 = vector.broadcast %cst_162 : f32 to vector<1x64xf32>
      %383 = arith.addf %374, %382 : vector<1x64xf32>
      %384 = tpu.reciprocal %383 {approx = true} : vector<1x64xf32> -> vector<1x64xf32>
      %385 = arith.mulf %380, %384 : vector<1x64xf32>
      %cst_163 = arith.constant 1.000000e+00 : f32
      %386 = vector.broadcast %cst_163 : f32 to vector<1x64xf32>
      %387 = arith.minimumf %385, %386 : vector<1x64xf32>
      %388 = arith.mulf %387, %381 : vector<1x64xf32>
      %389 = arith.addf %370, %388 : vector<1x64xf32>
      %390 = vector.extract_strided_slice %120 {offsets = [14, 0], sizes = [1, 64], strides = [1, 1]} : vector<19x64xf32> to vector<1x64xf32>
      %391 = arith.subf %390, %371 : vector<1x64xf32>
      %cst_164 = arith.constant 0.000000e+00 : f32
      %392 = vector.broadcast %cst_164 : f32 to vector<1x64xf32>
      %393 = arith.maximumf %391, %392 : vector<1x64xf32>
      %cst_165 = arith.constant -4.000000e+00 : f32
      %394 = vector.broadcast %cst_165 : f32 to vector<1x64xf32>
      %395 = arith.addf %119, %394 : vector<1x64xf32>
      %cst_166 = arith.constant 0.000000e+00 : f32
      %cst_167 = arith.constant 1.000000e+00 : f32
      %396 = vector.broadcast %cst_166 : f32 to vector<1x64xf32>
      %397 = arith.maximumf %396, %395 : vector<1x64xf32>
      %398 = vector.broadcast %cst_167 : f32 to vector<1x64xf32>
      %399 = arith.minimumf %398, %397 : vector<1x64xf32>
      %400 = arith.subf %399, %380 : vector<1x64xf32>
      %cst_168 = arith.constant 1.000000e-16 : f32
      %401 = vector.broadcast %cst_168 : f32 to vector<1x64xf32>
      %402 = arith.addf %393, %401 : vector<1x64xf32>
      %403 = tpu.reciprocal %402 {approx = true} : vector<1x64xf32> -> vector<1x64xf32>
      %404 = arith.mulf %399, %403 : vector<1x64xf32>
      %cst_169 = arith.constant 1.000000e+00 : f32
      %405 = vector.broadcast %cst_169 : f32 to vector<1x64xf32>
      %406 = arith.minimumf %404, %405 : vector<1x64xf32>
      %407 = arith.mulf %406, %400 : vector<1x64xf32>
      %408 = arith.addf %389, %407 : vector<1x64xf32>
      %409 = vector.extract_strided_slice %120 {offsets = [15, 0], sizes = [1, 64], strides = [1, 1]} : vector<19x64xf32> to vector<1x64xf32>
      %410 = arith.subf %409, %390 : vector<1x64xf32>
      %cst_170 = arith.constant 0.000000e+00 : f32
      %411 = vector.broadcast %cst_170 : f32 to vector<1x64xf32>
      %412 = arith.maximumf %410, %411 : vector<1x64xf32>
      %cst_171 = arith.constant -3.000000e+00 : f32
      %413 = vector.broadcast %cst_171 : f32 to vector<1x64xf32>
      %414 = arith.addf %119, %413 : vector<1x64xf32>
      %cst_172 = arith.constant 0.000000e+00 : f32
      %cst_173 = arith.constant 1.000000e+00 : f32
      %415 = vector.broadcast %cst_172 : f32 to vector<1x64xf32>
      %416 = arith.maximumf %415, %414 : vector<1x64xf32>
      %417 = vector.broadcast %cst_173 : f32 to vector<1x64xf32>
      %418 = arith.minimumf %417, %416 : vector<1x64xf32>
      %419 = arith.subf %418, %399 : vector<1x64xf32>
      %cst_174 = arith.constant 1.000000e-16 : f32
      %420 = vector.broadcast %cst_174 : f32 to vector<1x64xf32>
      %421 = arith.addf %412, %420 : vector<1x64xf32>
      %422 = tpu.reciprocal %421 {approx = true} : vector<1x64xf32> -> vector<1x64xf32>
      %423 = arith.mulf %418, %422 : vector<1x64xf32>
      %cst_175 = arith.constant 1.000000e+00 : f32
      %424 = vector.broadcast %cst_175 : f32 to vector<1x64xf32>
      %425 = arith.minimumf %423, %424 : vector<1x64xf32>
      %426 = arith.mulf %425, %419 : vector<1x64xf32>
      %427 = arith.addf %408, %426 : vector<1x64xf32>
      %428 = vector.extract_strided_slice %120 {offsets = [16, 0], sizes = [1, 64], strides = [1, 1]} : vector<19x64xf32> to vector<1x64xf32>
      %429 = arith.subf %428, %409 : vector<1x64xf32>
      %cst_176 = arith.constant 0.000000e+00 : f32
      %430 = vector.broadcast %cst_176 : f32 to vector<1x64xf32>
      %431 = arith.maximumf %429, %430 : vector<1x64xf32>
      %cst_177 = arith.constant -2.000000e+00 : f32
      %432 = vector.broadcast %cst_177 : f32 to vector<1x64xf32>
      %433 = arith.addf %119, %432 : vector<1x64xf32>
      %cst_178 = arith.constant 0.000000e+00 : f32
      %cst_179 = arith.constant 1.000000e+00 : f32
      %434 = vector.broadcast %cst_178 : f32 to vector<1x64xf32>
      %435 = arith.maximumf %434, %433 : vector<1x64xf32>
      %436 = vector.broadcast %cst_179 : f32 to vector<1x64xf32>
      %437 = arith.minimumf %436, %435 : vector<1x64xf32>
      %438 = arith.subf %437, %418 : vector<1x64xf32>
      %cst_180 = arith.constant 1.000000e-16 : f32
      %439 = vector.broadcast %cst_180 : f32 to vector<1x64xf32>
      %440 = arith.addf %431, %439 : vector<1x64xf32>
      %441 = tpu.reciprocal %440 {approx = true} : vector<1x64xf32> -> vector<1x64xf32>
      %442 = arith.mulf %437, %441 : vector<1x64xf32>
      %cst_181 = arith.constant 1.000000e+00 : f32
      %443 = vector.broadcast %cst_181 : f32 to vector<1x64xf32>
      %444 = arith.minimumf %442, %443 : vector<1x64xf32>
      %445 = arith.mulf %444, %438 : vector<1x64xf32>
      %446 = arith.addf %427, %445 : vector<1x64xf32>
      %447 = vector.extract_strided_slice %120 {offsets = [17, 0], sizes = [1, 64], strides = [1, 1]} : vector<19x64xf32> to vector<1x64xf32>
      %448 = arith.subf %447, %428 : vector<1x64xf32>
      %cst_182 = arith.constant 0.000000e+00 : f32
      %449 = vector.broadcast %cst_182 : f32 to vector<1x64xf32>
      %450 = arith.maximumf %448, %449 : vector<1x64xf32>
      %cst_183 = arith.constant -1.000000e+00 : f32
      %451 = vector.broadcast %cst_183 : f32 to vector<1x64xf32>
      %452 = arith.addf %119, %451 : vector<1x64xf32>
      %cst_184 = arith.constant 0.000000e+00 : f32
      %cst_185 = arith.constant 1.000000e+00 : f32
      %453 = vector.broadcast %cst_184 : f32 to vector<1x64xf32>
      %454 = arith.maximumf %453, %452 : vector<1x64xf32>
      %455 = vector.broadcast %cst_185 : f32 to vector<1x64xf32>
      %456 = arith.minimumf %455, %454 : vector<1x64xf32>
      %457 = arith.subf %456, %437 : vector<1x64xf32>
      %cst_186 = arith.constant 1.000000e-16 : f32
      %458 = vector.broadcast %cst_186 : f32 to vector<1x64xf32>
      %459 = arith.addf %450, %458 : vector<1x64xf32>
      %460 = tpu.reciprocal %459 {approx = true} : vector<1x64xf32> -> vector<1x64xf32>
      %461 = arith.mulf %456, %460 : vector<1x64xf32>
      %cst_187 = arith.constant 1.000000e+00 : f32
      %462 = vector.broadcast %cst_187 : f32 to vector<1x64xf32>
      %463 = arith.minimumf %461, %462 : vector<1x64xf32>
      %464 = arith.mulf %463, %457 : vector<1x64xf32>
      %465 = arith.addf %446, %464 : vector<1x64xf32>
      %466 = vector.extract_strided_slice %120 {offsets = [18, 0], sizes = [1, 64], strides = [1, 1]} : vector<19x64xf32> to vector<1x64xf32>
      %467 = arith.subf %466, %447 : vector<1x64xf32>
      %cst_188 = arith.constant 0.000000e+00 : f32
      %468 = vector.broadcast %cst_188 : f32 to vector<1x64xf32>
      %469 = arith.maximumf %467, %468 : vector<1x64xf32>
      %cst_189 = arith.constant 0.000000e+00 : f32
      %470 = vector.broadcast %cst_189 : f32 to vector<1x64xf32>
      %471 = arith.addf %119, %470 : vector<1x64xf32>
      %cst_190 = arith.constant 0.000000e+00 : f32
      %cst_191 = arith.constant 1.000000e+00 : f32
      %472 = vector.broadcast %cst_190 : f32 to vector<1x64xf32>
      %473 = arith.maximumf %472, %471 : vector<1x64xf32>
      %474 = vector.broadcast %cst_191 : f32 to vector<1x64xf32>
      %475 = arith.minimumf %474, %473 : vector<1x64xf32>
      %476 = arith.subf %475, %456 : vector<1x64xf32>
      %cst_192 = arith.constant 1.000000e-16 : f32
      %477 = vector.broadcast %cst_192 : f32 to vector<1x64xf32>
      %478 = arith.addf %469, %477 : vector<1x64xf32>
      %479 = tpu.reciprocal %478 {approx = true} : vector<1x64xf32> -> vector<1x64xf32>
      %480 = arith.mulf %475, %479 : vector<1x64xf32>
      %cst_193 = arith.constant 1.000000e+00 : f32
      %481 = vector.broadcast %cst_193 : f32 to vector<1x64xf32>
      %482 = arith.minimumf %480, %481 : vector<1x64xf32>
      %483 = arith.mulf %482, %476 : vector<1x64xf32>
      %484 = arith.addf %465, %483 : vector<1x64xf32>
      %cst_194 = arith.constant 6.400000e+01 : f32
      %485 = vector.broadcast %cst_194 : f32 to vector<1x64xf32>
      %cst_195 = arith.constant 1.000000e+00 : f32
      %486 = vector.broadcast %cst_195 : f32 to vector<1x64xf32>
      %487 = arith.addf %119, %486 : vector<1x64xf32>
      %cst_196 = arith.constant 0.000000e+00 : f32
      %cst_197 = arith.constant 1.000000e+00 : f32
      %488 = vector.broadcast %cst_196 : f32 to vector<1x64xf32>
      %489 = arith.maximumf %488, %487 : vector<1x64xf32>
      %490 = vector.broadcast %cst_197 : f32 to vector<1x64xf32>
      %491 = arith.minimumf %490, %489 : vector<1x64xf32>
      %492 = arith.subf %491, %475 : vector<1x64xf32>
      %cst_198 = arith.constant 1.000000e-16 : f32
      %493 = vector.broadcast %cst_198 : f32 to vector<1x64xf32>
      %494 = arith.addf %485, %493 : vector<1x64xf32>
      %495 = tpu.reciprocal %494 {approx = true} : vector<1x64xf32> -> vector<1x64xf32>
      %496 = arith.mulf %491, %495 : vector<1x64xf32>
      %cst_199 = arith.constant 1.000000e+00 : f32
      %497 = vector.broadcast %cst_199 : f32 to vector<1x64xf32>
      %498 = arith.minimumf %496, %497 : vector<1x64xf32>
      %499 = arith.mulf %498, %492 : vector<1x64xf32>
      %500 = arith.addf %484, %499 : vector<1x64xf32>
      %cst_200 = arith.constant 1.000000e-16 : f32
      %501 = vector.broadcast %cst_200 : f32 to vector<1x64xf32>
      %502 = arith.maximumf %491, %501 : vector<1x64xf32>
      %503 = tpu.reciprocal %502 {approx = true} : vector<1x64xf32> -> vector<1x64xf32>
      %504 = arith.mulf %500, %503 : vector<1x64xf32>
      %505 = vector.shape_cast %504 : vector<1x64xf32> to vector<1x1x64xf32>
      %c0_201 = arith.constant 0 : index
      %c0_202 = arith.constant 0 : index
      %c0_203 = arith.constant 0 : index
      %506 = vector.load %arg6[%c0_201, %c0_202, %c0_203] : memref<1x1x64xf32, #tpu.memory_space<vmem>>, vector<1x1x64xf32>
      tpu.vector_store %arg6[%c0_201, %c0_202, %c0_203], %505 {strides = array<i32>} : memref<1x1x64xf32, #tpu.memory_space<vmem>>, vector<1x1x64xf32>,
    } else {
    }
    return
  }
  func.func @transform_0(%arg0: i32, %arg1: i32, %arg2: i32) -> (i32, i32, i32) {
    %c0_i32 = arith.constant 0 : i32
    %c0_i32_0 = arith.constant 0 : i32
    return %arg0, %c0_i32, %arg1 : i32, i32, i32
  }
  func.func @transform_1(%arg0: i32, %arg1: i32, %arg2: i32) -> (i32, i32, i32) {
    %c0_i32 = arith.constant 0 : i32
    %c0_i32_0 = arith.constant 0 : i32
    return %arg0, %c0_i32, %arg1 : i32, i32, i32
  }
  func.func @transform_2(%arg0: i32, %arg1: i32, %arg2: i32) -> (i32, i32, i32) {
    %c0_i32 = arith.constant 0 : i32
    %c0_i32_0 = arith.constant 0 : i32
    return %arg0, %arg2, %c0_i32 : i32, i32, i32
  }
  func.func @transform_3(%arg0: i32, %arg1: i32, %arg2: i32) -> (i32, i32, i32) {
    %c0_i32 = arith.constant 0 : i32
    %c0_i32_0 = arith.constant 0 : i32
    return %arg0, %c0_i32, %arg1 : i32, i32, i32
  }
}

</mosaic_0001>

<llo_original>
// kernel: custom_pixel_ap_loss.1
$region0: #{custom_pixel_ap_loss.1}
  #allocation0 [shape = 'u32[]', space=smem, size = 0x4, offset = 0x4, fixed_abs, tag = 'smem constant byte address 0x4 - core index']
  #allocation1 [shape = 'u32[144,128]{1,0:T(1,128)}', space=vmem, size = 0x12000, scoped, tag = 'internal scratch']
  #allocation2 [shape = 'f32[19,64]{1,0:T(8,128)}', space=vmem, size = 0x3000, scoped, tag = 'scratch operand']
  %s0 = inlined_call_operand.vmem [shape: f32[2,1,64], index: 0, kind: input, shape index: {}]
  %s1 = inlined_call_operand.vmem [shape: bf16[2,16,64], index: 1, kind: input, shape index: {}]
  %s2 = inlined_call_operand.vmem [shape: bf16[2,64,16], index: 2, kind: input, shape index: {}]
  %s3 = inlined_call_operand.vmem [shape: f32[2,1,64], index: 3, kind: output, shape index: {}]
  %s4 = sld [smem:[#allocation0]]
  $region53: #{custom_pixel_ap_loss.1} parent=0
    _
  %s6 = ssub.s32 1, %s4
  %s7 = scalar_select 0, %s6, %s4
  loop: start=0, step=1, limit=4
  $region2: #{custom_pixel_ap_loss.1} parent=0 // loop_pre_header
    _
  $region3: #{custom_pixel_ap_loss.1} parent=0 // loop_header
    %s9 = sphi 0, %s13
    %p10 = scmp.ge.s32.totalorder %s9, 4
    %s16 = sphi 0, %s35
    %s17 = sphi 0, %s31
    %s18 = sphi 0, %s27
    %s19 = sphi 0, %s16
    %s20 = sphi 0, %s17
    %s21 = sphi 0, %s18
    %s22 = sphi 0, %s19
    %s23 = sphi 0, %s20
    %s24 = sphi 0, %s21
    %s40 = sphi 0, %s42
    %s43 = sphi 0, %s40
    %s44 = sphi 0, %s43
    %s60 = sphi 0, %s44
    %s68 = sphi 0, %s70
    %s71 = sphi 0, %s68
    %s72 = sphi 0, %s71
    %s88 = sphi 0, %s72
    %s96 = sphi 0, %s98
    %s99 = sphi 0, %s96
    %s100 = sphi 0, %s99
    %s116 = sphi 0, %s100
    %s124 = sphi 0, %s126
    %s127 = sphi 0, %s124
    %s128 = sphi 0, %s127
    %s144 = sphi 0, %s128
  $region4: #{custom_pixel_ap_loss.1} parent=0 // loop_header_branch
    %12 = sbr.rel (%p10) target = $region8
  $region5: #{custom_pixel_ap_loss.1} parent=0 // loop_body
    %s14 = ssub.s32 %s9, 1
    %s15 = ssub.s32 %s9, 2
    %s25 = sadd.s32 1, %s18
    %p26 = scmp.ge.s32.totalorder %s25, 1
    %s27 = scalar_select %p26, 0, %s25
    %s28 = sadd.s32 1, %s17
    %s29 = scalar_select %p26, %s28, %s17
    %p30 = scmp.ge.s32.totalorder %s29, 1
    %s31 = scalar_select %p30, 0, %s29
    %s32 = sadd.s32 1, %s16
    %s33 = scalar_select %p30, %s32, %s16
    %p34 = scmp.ge.s32.totalorder %s33, 2
    %s35 = scalar_select %p34, 0, %s33
    %s36 = ssub.s32 %s16, %s35
    %s37 = ssub.s32 %s17, %s31
    %s38 = sor.u32 %s36, %s37
    %p39 = scmp.eq.s32.totalorder %s38, 0
    %s41 = sadd.s32 %s40, 1
    %s42 = scalar_select %p39, %s40, %s41
    %p45 = pneg %p39
    %p46 = scmp.eq.s32.totalorder %s9, 1
    %p47 = por %p45, %p46
    %p48 = scmp.ne.s32.totalorder %s40, %s43
    %p49 = scmp.eq.s32.totalorder %s9, 0
    %p50 = por %p48, %p49
    %p51 = scmp.ne.s32.totalorder %s40, %s43
    %p52 = scmp.eq.s32.totalorder %s14, 1
    %p53 = por %p51, %p52
    %p54 = scmp.ne.s32.totalorder %s43, %s44
    %p55 = scmp.eq.s32.totalorder %s14, 0
    %p56 = por %p54, %p55
    %p57 = scmp.ne.s32.totalorder %s43, %s44
    %p58 = scmp.eq.s32.totalorder %s15, 1
    %p59 = por %p57, %p58
    %p61 = scmp.ne.s32.totalorder %s44, %s60
    %p62 = scmp.eq.s32.totalorder %s15, 0
    %p63 = por %p61, %p62
    %s64 = ssub.s32 %s16, %s35
    %s65 = ssub.s32 %s17, %s31
    %s66 = sor.u32 %s64, %s65
    %p67 = scmp.eq.s32.totalorder %s66, 0
    %s69 = sadd.s32 %s68, 1
    %s70 = scalar_select %p67, %s68, %s69
    %p73 = pneg %p67
    %p74 = scmp.eq.s32.totalorder %s9, 1
    %p75 = por %p73, %p74
    %p76 = scmp.ne.s32.totalorder %s68, %s71
    %p77 = scmp.eq.s32.totalorder %s9, 0
    %p78 = por %p76, %p77
    %p79 = scmp.ne.s32.totalorder %s68, %s71
    %p80 = scmp.eq.s32.totalorder %s14, 1
    %p81 = por %p79, %p80
    %p82 = scmp.ne.s32.totalorder %s71, %s72
    %p83 = scmp.eq.s32.totalorder %s14, 0
    %p84 = por %p82, %p83
    %p85 = scmp.ne.s32.totalorder %s71, %s72
    %p86 = scmp.eq.s32.totalorder %s15, 1
    %p87 = por %p85, %p86
    %p89 = scmp.ne.s32.totalorder %s72, %s88
    %p90 = scmp.eq.s32.totalorder %s15, 0
    %p91 = por %p89, %p90
    %s92 = ssub.s32 %s16, %s35
    %s93 = ssub.s32 %s18, %s27
    %s94 = sor.u32 %s92, %s93
    %p95 = scmp.eq.s32.totalorder %s94, 0
    %s97 = sadd.s32 %s96, 1
    %s98 = scalar_select %p95, %s96, %s97
    %p101 = pneg %p95
    %p102 = scmp.eq.s32.totalorder %s9, 1
    %p103 = por %p101, %p102
    %p104 = scmp.ne.s32.totalorder %s96, %s99
    %p105 = scmp.eq.s32.totalorder %s9, 0
    %p106 = por %p104, %p105
    %p107 = scmp.ne.s32.totalorder %s96, %s99
    %p108 = scmp.eq.s32.totalorder %s14, 1
    %p109 = por %p107, %p108
    %p110 = scmp.ne.s32.totalorder %s99, %s100
    %p111 = scmp.eq.s32.totalorder %s14, 0
    %p112 = por %p110, %p111
    %p113 = scmp.ne.s32.totalorder %s99, %s100
    %p114 = scmp.eq.s32.totalorder %s15, 1
    %p115 = por %p113, %p114
    %p117 = scmp.ne.s32.totalorder %s100, %s116
    %p118 = scmp.eq.s32.totalorder %s15, 0
    %p119 = por %p117, %p118
    %s120 = ssub.s32 %s16, %s35
    %s121 = ssub.s32 %s17, %s31
    %s122 = sor.u32 %s120, %s121
    %p123 = scmp.eq.s32.totalorder %s122, 0
    %s125 = sadd.s32 %s124, 1
    %s126 = scalar_select %p123, %s124, %s125
    %p129 = pneg %p123
    %p130 = scmp.eq.s32.totalorder %s9, 1
    %p131 = por %p129, %p130
    %p132 = scmp.ne.s32.totalorder %s124, %s127
    %p133 = scmp.eq.s32.totalorder %s9, 0
    %p134 = por %p132, %p133
    %p135 = scmp.ne.s32.totalorder %s124, %s127
    %p136 = scmp.eq.s32.totalorder %s14, 1
    %p137 = por %p135, %p136
    %p138 = scmp.ne.s32.totalorder %s127, %s128
    %p139 = scmp.eq.s32.totalorder %s14, 0
    %p140 = por %p138, %p139
    %p141 = scmp.ne.s32.totalorder %s127, %s128
    %p142 = scmp.eq.s32.totalorder %s15, 1
    %p143 = por %p141, %p142
    %p145 = scmp.ne.s32.totalorder %s128, %s144
    %p146 = scmp.eq.s32.totalorder %s15, 0
    %p147 = por %p145, %p146
    %p148 = scmp.le.s32.totalorder 1, %s9
    %p149 = scmp.lt.s32.totalorder %s9, 3
    %p150 = pnand %p148, %p149
    %p151 = pneg %p150
    // Predicated region
    $region9: #{custom_pixel_ap_loss.1} parent=5 // pred_check
      _
    $region10: #{custom_pixel_ap_loss.1} parent=5 // pred_check_branch
      %153 = sbr.rel (%p150) target = $region12
    $region11: #{custom_pixel_ap_loss.1} parent=5 // pred_region
      %s154 = ssub.s32 %s9, 1
    $region12: #{custom_pixel_ap_loss.1} parent=5 // pred_fallthru
      _
    %p155 = scmp.lt.s32.totalorder %s9, 2
    // Predicated region
    $region13: #{custom_pixel_ap_loss.1} parent=5 // pred_check
      %p156 = pneg %p155
    $region14: #{custom_pixel_ap_loss.1} parent=5 // pred_check_branch
      %158 = sbr.rel (%p156) target = $region16
    $region15: #{custom_pixel_ap_loss.1} parent=5 // pred_region
      // Predicated region
      $region17: #{custom_pixel_ap_loss.1} parent=15 // pred_check
        %p159 = pneg %p50
      $region18: #{custom_pixel_ap_loss.1} parent=15 // pred_check_branch
        %161 = sbr.rel (%p159) target = $region20
      $region19: #{custom_pixel_ap_loss.1} parent=15 // pred_region
        %p162 = scmp.lt.s32.totalorder %s16, 1
        %s163 = scalar_select %p162, %s16, 1
        %p164 = scmp.lt.s32.totalorder %s17, 0
        %s165 = scalar_select %p164, %s17, 0
        %s166 = sadd.s32 %s165, %s163
        %s167 = scalar_lea.vmem %s0, %s166
      $region20: #{custom_pixel_ap_loss.1} parent=15 // pred_fallthru
        _
      // Predicated region
      $region21: #{custom_pixel_ap_loss.1} parent=15 // pred_check
        %p168 = pneg %p78
      $region22: #{custom_pixel_ap_loss.1} parent=15 // pred_check_branch
        %170 = sbr.rel (%p168) target = $region24
      $region23: #{custom_pixel_ap_loss.1} parent=15 // pred_region
        %p171 = scmp.lt.s32.totalorder %s16, 1
        %s172 = scalar_select %p171, %s16, 1
        %p173 = scmp.lt.s32.totalorder %s17, 0
        %s174 = scalar_select %p173, %s17, 0
        %s175 = smul.addr %s172, 2
        %s176 = sadd.s32 %s174, %s175
        %s177 = smul.addr %s176, 4
        %s178 = scalar_lea.vmem %s1, %s177
      $region24: #{custom_pixel_ap_loss.1} parent=15 // pred_fallthru
        _
      // Predicated region
      $region25: #{custom_pixel_ap_loss.1} parent=15 // pred_check
        %p179 = pneg %p106
      $region26: #{custom_pixel_ap_loss.1} parent=15 // pred_check_branch
        %181 = sbr.rel (%p179) target = $region28
      $region27: #{custom_pixel_ap_loss.1} parent=15 // pred_region
        %s182 = smul.u32 8, %s18
        %p183 = scmp.lt.s32.totalorder %s16, 1
        %s184 = scalar_select %p183, %s16, 1
        %p185 = scmp.lt.s32.totalorder %s182, 7
        %s186 = scalar_select %p185, %s182, 7
        %s187 = smul.addr %s184, 8
        %s188 = sadd.s32 %s186, %s187
        %s189 = smul.addr %s188, 4
        %s190 = scalar_lea.vmem %s2, %s189
        %s191 = smul.u32 8, %s18
      $region28: #{custom_pixel_ap_loss.1} parent=15 // pred_fallthru
        _
    $region16: #{custom_pixel_ap_loss.1} parent=5 // pred_fallthru
      _
    %p192 = scmp.le.s32.totalorder 1, %s9
    %p193 = scmp.lt.s32.totalorder %s9, 3
    %p194 = pnand %p192, %p193
    %p195 = pneg %p194
    // Predicated region
    $region29: #{custom_pixel_ap_loss.1} parent=5 // pred_check
      _
    $region30: #{custom_pixel_ap_loss.1} parent=5 // pred_check_branch
      %197 = sbr.rel (%p194) target = $region32
    $region31: #{custom_pixel_ap_loss.1} parent=5 // pred_region
      %s198 = ssub.s32 %s9, 1
      %p199 = scmp.lt.s32.totalorder %s19, 1
      %s200 = scalar_select %p199, %s19, 1
      %p201 = scmp.lt.s32.totalorder %s20, 0
      %s202 = scalar_select %p201, %s20, 0
      %s203 = sadd.s32 %s202, %s200
      %s204 = scalar_lea.vmem %s0, %s203
      %p205 = pneg %p56
      %p206 = pneg %p53
      %p207 = scmp.lt.s32.totalorder %s19, 1
      %s208 = scalar_select %p207, %s19, 1
      %p209 = scmp.lt.s32.totalorder %s20, 0
      %s210 = scalar_select %p209, %s20, 0
      %s211 = smul.addr %s208, 2
      %s212 = sadd.s32 %s210, %s211
      %s213 = smul.addr %s212, 4
      %s214 = scalar_lea.vmem %s1, %s213
      %p215 = pneg %p84
      %p216 = pneg %p81
      %s217 = smul.u32 8, %s21
      %p218 = scmp.lt.s32.totalorder %s19, 1
      %s219 = scalar_select %p218, %s19, 1
      %p220 = scmp.lt.s32.totalorder %s217, 7
      %s221 = scalar_select %p220, %s217, 7
      %s222 = smul.addr %s219, 8
      %s223 = sadd.s32 %s221, %s222
      %s224 = smul.addr %s223, 4
      %s225 = scalar_lea.vmem %s2, %s224
      %p226 = pneg %p112
      %p227 = pneg %p109
      %p228 = pneg %p140
      %p229 = pneg %p137
      %p230 = scmp.lt.s32.totalorder %s19, 1
      %s231 = scalar_select %p230, %s19, 1
      %p232 = scmp.lt.s32.totalorder %s20, 0
      %s233 = scalar_select %p232, %s20, 0
      %s234 = sadd.s32 %s233, %s231
      %s235 = scalar_lea.vmem %s3, %s234
      %p236 = scmp.lt.s32.totalorder %s19, 1
      %s237 = scalar_select %p236, %s19, 1
      %p238 = scmp.lt.s32.totalorder %s20, 0
      %s239 = scalar_select %p238, %s20, 0
      %s240 = sadd.s32 %s239, %s237
      %s241 = scalar_lea.vmem %s0, %s240
      %p242 = scmp.lt.s32.totalorder %s19, 1
      %s243 = scalar_select %p242, %s19, 1
      %p244 = scmp.lt.s32.totalorder %s20, 0
      %s245 = scalar_select %p244, %s20, 0
      %s246 = smul.addr %s243, 2
      %s247 = sadd.s32 %s245, %s246
      %s248 = smul.addr %s247, 4
      %s249 = scalar_lea.vmem %s1, %s248
      %s250 = smul.u32 8, %s21
      %p251 = scmp.lt.s32.totalorder %s19, 1
      %s252 = scalar_select %p251, %s19, 1
      %p253 = scmp.lt.s32.totalorder %s250, 7
      %s254 = scalar_select %p253, %s250, 7
      %s255 = smul.addr %s252, 8
      %s256 = sadd.s32 %s254, %s255
      %s257 = smul.addr %s256, 4
      %s258 = scalar_lea.vmem %s2, %s257
      %s259 = smul.u32 8, %s21
      %p260 = scmp.lt.s32.totalorder %s19, 1
      %s261 = scalar_select %p260, %s19, 1
      %p262 = scmp.lt.s32.totalorder %s20, 0
      %s263 = scalar_select %p262, %s20, 0
      %s264 = sadd.s32 %s263, %s261
      %s265 = scalar_lea.vmem %s3, %s264
      %p285 = scmp.eq.s32.totalorder %s21, 0
      // Predicated region
      $region33: #{custom_pixel_ap_loss.1} parent=31 // pred_check
        %p286 = pneg %p285
      $region34: #{custom_pixel_ap_loss.1} parent=31 // pred_check_branch
        %288 = sbr.rel (%p286) target = $region36
      $region35: #{custom_pixel_ap_loss.1} parent=31 // pred_region
        %vm289 = vcmask 523264
        %290 = vst.msk [vmem:[#allocation2] sm:$0xff] %vm289, 0.0
        %291 = vst.msk [vmem:[#allocation2 + $0x8] sm:$0xff] %vm289, 0.0
        %vm292 = vcmask 518144
        %293 = vst.msk [vmem:[#allocation2 + $0x10] sm:$0x7] %vm292, 0.0
      $region36: #{custom_pixel_ap_loss.1} parent=31 // pred_fallthru
        _
      %v294 = vld [vmem:[%s249] sm:$0xf]
      %v295 = vld [vmem:[%s249 + $0x4] sm:$0xf]
      %v296 = vld [vmem:[%s258] sm:$0xf]
      %v297 = vld [vmem:[%s258 + $0x4] sm:$0xf]
      %v298 = vld [vmem:[%s258 + $0x8] sm:$0xf]
      %v299 = vld [vmem:[%s258 + $0xc] sm:$0xf]
      %v300 = vld [vmem:[%s258 + $0x10] sm:$0xf]
      %v301 = vld [vmem:[%s258 + $0x14] sm:$0xf]
      %v302 = vld [vmem:[%s258 + $0x18] sm:$0xf]
      %v303 = vld [vmem:[%s258 + $0x1c] sm:$0xf]
      %v312 = vunpack.c.l.b16 %v296
      %v313 = vunpack.c.l.b16 %v297
      %v314 = vunpack.c.l.b16 %v298
      %v315 = vunpack.c.l.b16 %v299
      %v316 = vunpack.c.l.b16 %v300
      %v317 = vunpack.c.l.b16 %v301
      %v318 = vunpack.c.l.b16 %v302
      %v319 = vunpack.c.l.b16 %v303
      %v320 = vpack.c.b16 %v313, %v312
      %v321 = vpack.c.b16 %v315, %v314
      %v322 = vpack.c.b16 %v317, %v316
      %v323 = vpack.c.b16 %v319, %v318
      %v326 = vunpack.c.l.b16 %v294
      %v327 = vunpack.c.l.b16 %v295
      %v328 = vpack.c.b16 %v327, %v326
      %vm330 = vcmask 130048
      %v332 = vsel %vm330, %v320, 0
      %v335 = vsel %vm330, %v321, 0
      %v338 = vsel %vm330, %v322, 0
      %v341 = vsel %vm330, %v323, 0
      %343 = vmatprep.subr.bf16.mxu0 0
      %344 = vmatpush1.bf16.msra.mxu0 %v328
      %345 = vmatprep.subr.bf16.mxu0 0
      %346 = vmatpush1.bf16.msra.mxu0 0
      %347 = vmatprep.subr.bf16.mxu0 0
      %348 = vmatpush1.bf16.msra.mxu0 0
      %349 = vmatprep.subr.bf16.mxu0 0
      %350 = vmatpush1.bf16.msra.mxu0 0
      %351 = vmatprep.subr.bf16.mxu0 0
      %352 = vmatpush1.bf16.msra.mxu0 0
      %353 = vmatprep.subr.bf16.mxu0 0
      %354 = vmatpush1.bf16.msra.mxu0 0
      %355 = vmatprep.subr.bf16.mxu0 0
      %356 = vmatpush1.bf16.msra.mxu0 0
      %357 = vmatprep.subr.bf16.mxu0 0
      %358 = vmatpush1.bf16.msra.mxu0 0
      %359 = vmatprep.subr.bf16.mxu0 0
      %360 = vmatpush1.bf16.msra.mxu0 0
      %361 = vmatprep.subr.bf16.mxu0 0
      %362 = vmatpush1.bf16.msra.mxu0 0
      %363 = vmatprep.subr.bf16.mxu0 0
      %364 = vmatpush1.bf16.msra.mxu0 0
      %365 = vmatprep.subr.bf16.mxu0 0
      %366 = vmatpush1.bf16.msra.mxu0 0
      %367 = vmatprep.subr.bf16.mxu0 0
      %368 = vmatpush1.bf16.msra.mxu0 0
      %369 = vmatprep.subr.bf16.mxu0 0
      %370 = vmatpush1.bf16.msra.mxu0 0
      %371 = vmatprep.subr.bf16.mxu0 0
      %372 = vmatpush1.bf16.msra.mxu0 0
      %373 = vmatprep.subr.bf16.mxu0 0
      %374 = vmatpush1.bf16.msra.mxu0 0
      %375 = vmatprep.mubr.bf16.mxu0 0
      %376 = vmatmul.mubr.bf16.gmra.mrb[0].mxu0 %v332
      %v377 = vpop.f32.mrb[0].mxu0
      %v378 = vadd.f32 0.0, %v377
      %v379 = vpop.f32.mrb[0].mxu0
      %v380 = vpop.f32.mrb[0].mxu0
      %v381 = vadd.f32 0.0, %v380
      %v382 = vpop.f32.mrb[0].mxu0
      %383 = vmatprep.mubr.bf16.mxu0 0
      %384 = vmatmul.mubr.bf16.gmra.mrb[0].mxu0 %v335
      %v385 = vpop.f32.mrb[0].mxu0
      %v386 = vadd.f32 0.0, %v385
      %v387 = vpop.f32.mrb[0].mxu0
      %v388 = vpop.f32.mrb[0].mxu0
      %v389 = vadd.f32 0.0, %v388
      %v390 = vpop.f32.mrb[0].mxu0
      %391 = vmatprep.mubr.bf16.mxu0 0
      %392 = vmatmul.mubr.bf16.gmra.mrb[0].mxu0 %v338
      %v393 = vpop.f32.mrb[0].mxu0
      %v394 = vadd.f32 0.0, %v393
      %v395 = vpop.f32.mrb[0].mxu0
      %v396 = vpop.f32.mrb[0].mxu0
      %v397 = vadd.f32 0.0, %v396
      %v398 = vpop.f32.mrb[0].mxu0
      %399 = vmatprep.mubr.bf16.mxu0 0
      %400 = vmatmul.mubr.bf16.gmra.mrb[0].mxu0 %v341
      %v401 = vpop.f32.mrb[0].mxu0
      %v402 = vadd.f32 0.0, %v401
      %v403 = vpop.f32.mrb[0].mxu0
      %v404 = vpop.f32.mrb[0].mxu0
      %v405 = vadd.f32 0.0, %v404
      %v406 = vpop.f32.mrb[0].mxu0
      %407 = vdwg.mxu0
      %v408 = vmul.f32 %v378, 9.5
      %v409 = vmul.f32 %v381, 9.5
      %v410 = vmul.f32 %v386, 9.5
      %v411 = vmul.f32 %v389, 9.5
      %v412 = vmul.f32 %v394, 9.5
      %v413 = vmul.f32 %v397, 9.5
      %v414 = vmul.f32 %v402, 9.5
      %v415 = vmul.f32 %v405, 9.5
      %v416 = vadd.f32 %v408, 9.5
      %v417 = vadd.f32 %v409, 9.5
      %v418 = vadd.f32 %v410, 9.5
      %v419 = vadd.f32 %v411, 9.5
      %v420 = vadd.f32 %v412, 9.5
      %v421 = vadd.f32 %v413, 9.5
      %v422 = vadd.f32 %v414, 9.5
      %v423 = vadd.f32 %v415, 9.5
      %v424 = vpack.c.bf16 %v417, %v416
      %v425 = vpack.c.bf16 %v419, %v418
      %v426 = vpack.c.bf16 %v421, %v420
      %v427 = vpack.c.bf16 %v423, %v422
      %v428 = vmax.bf16 %v424, 1099973008
      %v429 = vmax.bf16 %v425, 1099973008
      %v430 = vmax.bf16 %v426, 1099973008
      %v431 = vmax.bf16 %v427, 1099973008
      %vm432 = vcmask 523264
      %v434 = vsel %vm432, 1065369472, 0
      %436 = vmatprep.subr.bf16.mxu0 0
      %437 = vmatpush1.bf16.msra.mxu0 %v428
      %438 = vmatprep.subr.bf16.mxu0 0
      %439 = vmatpush1.bf16.msra.mxu0 %v429
      %440 = vmatprep.subr.bf16.mxu0 0
      %441 = vmatpush1.bf16.msra.mxu0 %v430
      %442 = vmatprep.subr.bf16.mxu0 0
      %443 = vmatpush1.bf16.msra.mxu0 %v431
      %444 = vmatprep.subr.bf16.mxu0 0
      %445 = vmatpush1.bf16.msra.mxu0 0
      %446 = vmatprep.subr.bf16.mxu0 0
      %447 = vmatpush1.bf16.msra.mxu0 0
      %448 = vmatprep.subr.bf16.mxu0 0
      %449 = vmatpush1.bf16.msra.mxu0 0
      %450 = vmatprep.subr.bf16.mxu0 0
      %451 = vmatpush1.bf16.msra.mxu0 0
      %452 = vmatprep.subr.bf16.mxu0 0
      %453 = vmatpush1.bf16.msra.mxu0 0
      %454 = vmatprep.subr.bf16.mxu0 0
      %455 = vmatpush1.bf16.msra.mxu0 0
      %456 = vmatprep.subr.bf16.mxu0 0
      %457 = vmatpush1.bf16.msra.mxu0 0
      %458 = vmatprep.subr.bf16.mxu0 0
      %459 = vmatpush1.bf16.msra.mxu0 0
      %460 = vmatprep.subr.bf16.mxu0 0
      %461 = vmatpush1.bf16.msra.mxu0 0
      %462 = vmatprep.subr.bf16.mxu0 0
      %463 = vmatpush1.bf16.msra.mxu0 0
      %464 = vmatprep.subr.bf16.mxu0 0
      %465 = vmatpush1.bf16.msra.mxu0 0
      %466 = vmatprep.subr.bf16.mxu0 0
      %467 = vmatpush1.bf16.msra.mxu0 0
      %468 = vmatprep.mubr.bf16.mxu0 0
      %469 = vmatmul.mubr.bf16.gmra.mrb[0].mxu0 %v434
      %v470 = vpop.f32.mrb[0].mxu0
      %v471 = vadd.f32 -1152.0, %v470
      %v472 = vpop.f32.mrb[0].mxu0
      %v473 = vpop.f32.mrb[0].mxu0
      %v474 = vpop.f32.mrb[0].mxu0
      %475 = vdwg.mxu0
      %v476 = vmax.bf16 %v424, 1099448712
      %v477 = vmax.bf16 %v425, 1099448712
      %v478 = vmax.bf16 %v426, 1099448712
      %v479 = vmax.bf16 %v427, 1099448712
      %480 = vmatprep.subr.bf16.mxu0 0
      %481 = vmatpush1.bf16.msra.mxu0 %v476
      %482 = vmatprep.subr.bf16.mxu0 0
      %483 = vmatpush1.bf16.msra.mxu0 %v477
      %484 = vmatprep.subr.bf16.mxu0 0
      %485 = vmatpush1.bf16.msra.mxu0 %v478
      %486 = vmatprep.subr.bf16.mxu0 0
      %487 = vmatpush1.bf16.msra.mxu0 %v479
      %488 = vmatprep.subr.bf16.mxu0 0
      %489 = vmatpush1.bf16.msra.mxu0 0
      %490 = vmatprep.subr.bf16.mxu0 0
      %491 = vmatpush1.bf16.msra.mxu0 0
      %492 = vmatprep.subr.bf16.mxu0 0
      %493 = vmatpush1.bf16.msra.mxu0 0
      %494 = vmatprep.subr.bf16.mxu0 0
      %495 = vmatpush1.bf16.msra.mxu0 0
      %496 = vmatprep.subr.bf16.mxu0 0
      %497 = vmatpush1.bf16.msra.mxu0 0
      %498 = vmatprep.subr.bf16.mxu0 0
      %499 = vmatpush1.bf16.msra.mxu0 0
      %500 = vmatprep.subr.bf16.mxu0 0
      %501 = vmatpush1.bf16.msra.mxu0 0
      %502 = vmatprep.subr.bf16.mxu0 0
      %503 = vmatpush1.bf16.msra.mxu0 0
      %504 = vmatprep.subr.bf16.mxu0 0
      %505 = vmatpush1.bf16.msra.mxu0 0
      %506 = vmatprep.subr.bf16.mxu0 0
      %507 = vmatpush1.bf16.msra.mxu0 0
      %508 = vmatprep.subr.bf16.mxu0 0
      %509 = vmatpush1.bf16.msra.mxu0 0
      %510 = vmatprep.subr.bf16.mxu0 0
      %511 = vmatpush1.bf16.msra.mxu0 0
      %512 = vmatprep.mubr.bf16.mxu0 0
      %513 = vmatmul.mubr.bf16.gmra.mrb[0].mxu0 %v434
      %v514 = vpop.f32.mrb[0].mxu0
      %v515 = vadd.f32 -1088.0, %v514
      %v516 = vpop.f32.mrb[0].mxu0
      %v517 = vpop.f32.mrb[0].mxu0
      %v518 = vpop.f32.mrb[0].mxu0
      %519 = vdwg.mxu0
      %v520 = vmax.bf16 %v424, 1098924416
      %v521 = vmax.bf16 %v425, 1098924416
      %v522 = vmax.bf16 %v426, 1098924416
      %v523 = vmax.bf16 %v427, 1098924416
      %524 = vmatprep.subr.bf16.mxu0 0
      %525 = vmatpush1.bf16.msra.mxu0 %v520
      %526 = vmatprep.subr.bf16.mxu0 0
      %527 = vmatpush1.bf16.msra.mxu0 %v521
      %528 = vmatprep.subr.bf16.mxu0 0
      %529 = vmatpush1.bf16.msra.mxu0 %v522
      %530 = vmatprep.subr.bf16.mxu0 0
      %531 = vmatpush1.bf16.msra.mxu0 %v523
      %532 = vmatprep.subr.bf16.mxu0 0
      %533 = vmatpush1.bf16.msra.mxu0 0
      %534 = vmatprep.subr.bf16.mxu0 0
      %535 = vmatpush1.bf16.msra.mxu0 0
      %536 = vmatprep.subr.bf16.mxu0 0
      %537 = vmatpush1.bf16.msra.mxu0 0
      %538 = vmatprep.subr.bf16.mxu0 0
      %539 = vmatpush1.bf16.msra.mxu0 0
      %540 = vmatprep.subr.bf16.mxu0 0
      %541 = vmatpush1.bf16.msra.mxu0 0
      %542 = vmatprep.subr.bf16.mxu0 0
      %543 = vmatpush1.bf16.msra.mxu0 0
      %544 = vmatprep.subr.bf16.mxu0 0
      %545 = vmatpush1.bf16.msra.mxu0 0
      %546 = vmatprep.subr.bf16.mxu0 0
      %547 = vmatpush1.bf16.msra.mxu0 0
      %548 = vmatprep.subr.bf16.mxu0 0
      %549 = vmatpush1.bf16.msra.mxu0 0
      %550 = vmatprep.subr.bf16.mxu0 0
      %551 = vmatpush1.bf16.msra.mxu0 0
      %552 = vmatprep.subr.bf16.mxu0 0
      %553 = vmatpush1.bf16.msra.mxu0 0
      %554 = vmatprep.subr.bf16.mxu0 0
      %555 = vmatpush1.bf16.msra.mxu0 0
      %556 = vmatprep.mubr.bf16.mxu0 0
      %557 = vmatmul.mubr.bf16.gmra.mrb[0].mxu0 %v434
      %v558 = vpop.f32.mrb[0].mxu0
      %v559 = vadd.f32 -1024.0, %v558
      %v560 = vpop.f32.mrb[0].mxu0
      %v561 = vpop.f32.mrb[0].mxu0
      %v562 = vpop.f32.mrb[0].mxu0
      %563 = vdwg.mxu0
      %v564 = vmax.bf16 %v424, 1097875824
      %v565 = vmax.bf16 %v425, 1097875824
      %v566 = vmax.bf16 %v426, 1097875824
      %v567 = vmax.bf16 %v427, 1097875824
      %568 = vmatprep.subr.bf16.mxu0 0
      %569 = vmatpush1.bf16.msra.mxu0 %v564
      %570 = vmatprep.subr.bf16.mxu0 0
      %571 = vmatpush1.bf16.msra.mxu0 %v565
      %572 = vmatprep.subr.bf16.mxu0 0
      %573 = vmatpush1.bf16.msra.mxu0 %v566
      %574 = vmatprep.subr.bf16.mxu0 0
      %575 = vmatpush1.bf16.msra.mxu0 %v567
      %576 = vmatprep.subr.bf16.mxu0 0
      %577 = vmatpush1.bf16.msra.mxu0 0
      %578 = vmatprep.subr.bf16.mxu0 0
      %579 = vmatpush1.bf16.msra.mxu0 0
      %580 = vmatprep.subr.bf16.mxu0 0
      %581 = vmatpush1.bf16.msra.mxu0 0
      %582 = vmatprep.subr.bf16.mxu0 0
      %583 = vmatpush1.bf16.msra.mxu0 0
      %584 = vmatprep.subr.bf16.mxu0 0
      %585 = vmatpush1.bf16.msra.mxu0 0
      %586 = vmatprep.subr.bf16.mxu0 0
      %587 = vmatpush1.bf16.msra.mxu0 0
      %588 = vmatprep.subr.bf16.mxu0 0
      %589 = vmatpush1.bf16.msra.mxu0 0
      %590 = vmatprep.subr.bf16.mxu0 0
      %591 = vmatpush1.bf16.msra.mxu0 0
      %592 = vmatprep.subr.bf16.mxu0 0
      %593 = vmatpush1.bf16.msra.mxu0 0
      %594 = vmatprep.subr.bf16.mxu0 0
      %595 = vmatpush1.bf16.msra.mxu0 0
      %596 = vmatprep.subr.bf16.mxu0 0
      %597 = vmatpush1.bf16.msra.mxu0 0
      %598 = vmatprep.subr.bf16.mxu0 0
      %599 = vmatpush1.bf16.msra.mxu0 0
      %600 = vmatprep.mubr.bf16.mxu0 0
      %601 = vmatmul.mubr.bf16.gmra.mrb[0].mxu0 %v434
      %v602 = vpop.f32.mrb[0].mxu0
      %v603 = vadd.f32 -960.0, %v602
      %v604 = vpop.f32.mrb[0].mxu0
      %v605 = vpop.f32.mrb[0].mxu0
      %v606 = vpop.f32.mrb[0].mxu0
      %607 = vdwg.mxu0
      %v608 = vmax.bf16 %v424, 1096827232
      %v609 = vmax.bf16 %v425, 1096827232
      %v610 = vmax.bf16 %v426, 1096827232
      %v611 = vmax.bf16 %v427, 1096827232
      %612 = vmatprep.subr.bf16.mxu0 0
      %613 = vmatpush1.bf16.msra.mxu0 %v608
      %614 = vmatprep.subr.bf16.mxu0 0
      %615 = vmatpush1.bf16.msra.mxu0 %v609
      %616 = vmatprep.subr.bf16.mxu0 0
      %617 = vmatpush1.bf16.msra.mxu0 %v610
      %618 = vmatprep.subr.bf16.mxu0 0
      %619 = vmatpush1.bf16.msra.mxu0 %v611
      %620 = vmatprep.subr.bf16.mxu0 0
      %621 = vmatpush1.bf16.msra.mxu0 0
      %622 = vmatprep.subr.bf16.mxu0 0
      %623 = vmatpush1.bf16.msra.mxu0 0
      %624 = vmatprep.subr.bf16.mxu0 0
      %625 = vmatpush1.bf16.msra.mxu0 0
      %626 = vmatprep.subr.bf16.mxu0 0
      %627 = vmatpush1.bf16.msra.mxu0 0
      %628 = vmatprep.subr.bf16.mxu0 0
      %629 = vmatpush1.bf16.msra.mxu0 0
      %630 = vmatprep.subr.bf16.mxu0 0
      %631 = vmatpush1.bf16.msra.mxu0 0
      %632 = vmatprep.subr.bf16.mxu0 0
      %633 = vmatpush1.bf16.msra.mxu0 0
      %634 = vmatprep.subr.bf16.mxu0 0
      %635 = vmatpush1.bf16.msra.mxu0 0
      %636 = vmatprep.subr.bf16.mxu0 0
      %637 = vmatpush1.bf16.msra.mxu0 0
      %638 = vmatprep.subr.bf16.mxu0 0
      %639 = vmatpush1.bf16.msra.mxu0 0
      %640 = vmatprep.subr.bf16.mxu0 0
      %641 = vmatpush1.bf16.msra.mxu0 0
      %642 = vmatprep.subr.bf16.mxu0 0
      %643 = vmatpush1.bf16.msra.mxu0 0
      %644 = vmatprep.mubr.bf16.mxu0 0
      %645 = vmatmul.mubr.bf16.gmra.mrb[0].mxu0 %v434
      %v646 = vpop.f32.mrb[0].mxu0
      %v647 = vadd.f32 -896.0, %v646
      %v648 = vpop.f32.mrb[0].mxu0
      %v649 = vpop.f32.mrb[0].mxu0
      %v650 = vpop.f32.mrb[0].mxu0
      %651 = vdwg.mxu0
      %v652 = vmax.bf16 %v424, 1095778640
      %v653 = vmax.bf16 %v425, 1095778640
      %v654 = vmax.bf16 %v426, 1095778640
      %v655 = vmax.bf16 %v427, 1095778640
      %656 = vmatprep.subr.bf16.mxu0 0
      %657 = vmatpush1.bf16.msra.mxu0 %v652
      %658 = vmatprep.subr.bf16.mxu0 0
      %659 = vmatpush1.bf16.msra.mxu0 %v653
      %660 = vmatprep.subr.bf16.mxu0 0
      %661 = vmatpush1.bf16.msra.mxu0 %v654
      %662 = vmatprep.subr.bf16.mxu0 0
      %663 = vmatpush1.bf16.msra.mxu0 %v655
      %664 = vmatprep.subr.bf16.mxu0 0
      %665 = vmatpush1.bf16.msra.mxu0 0
      %666 = vmatprep.subr.bf16.mxu0 0
      %667 = vmatpush1.bf16.msra.mxu0 0
      %668 = vmatprep.subr.bf16.mxu0 0
      %669 = vmatpush1.bf16.msra.mxu0 0
      %670 = vmatprep.subr.bf16.mxu0 0
      %671 = vmatpush1.bf16.msra.mxu0 0
      %672 = vmatprep.subr.bf16.mxu0 0
      %673 = vmatpush1.bf16.msra.mxu0 0
      %674 = vmatprep.subr.bf16.mxu0 0
      %675 = vmatpush1.bf16.msra.mxu0 0
      %676 = vmatprep.subr.bf16.mxu0 0
      %677 = vmatpush1.bf16.msra.mxu0 0
      %678 = vmatprep.subr.bf16.mxu0 0
      %679 = vmatpush1.bf16.msra.mxu0 0
      %680 = vmatprep.subr.bf16.mxu0 0
      %681 = vmatpush1.bf16.msra.mxu0 0
      %682 = vmatprep.subr.bf16.mxu0 0
      %683 = vmatpush1.bf16.msra.mxu0 0
      %684 = vmatprep.subr.bf16.mxu0 0
      %685 = vmatpush1.bf16.msra.mxu0 0
      %686 = vmatprep.subr.bf16.mxu0 0
      %687 = vmatpush1.bf16.msra.mxu0 0
      %688 = vmatprep.mubr.bf16.mxu0 0
      %689 = vmatmul.mubr.bf16.gmra.mrb[0].mxu0 %v434
      %v690 = vpop.f32.mrb[0].mxu0
      %v691 = vadd.f32 -832.0, %v690
      %v692 = vpop.f32.mrb[0].mxu0
      %v693 = vpop.f32.mrb[0].mxu0
      %v694 = vpop.f32.mrb[0].mxu0
      %695 = vdwg.mxu0
      %v696 = vmax.bf16 %v424, 1094730048
      %v697 = vmax.bf16 %v425, 1094730048
      %v698 = vmax.bf16 %v426, 1094730048
      %v699 = vmax.bf16 %v427, 1094730048
      %700 = vmatprep.subr.bf16.mxu0 0
      %701 = vmatpush1.bf16.msra.mxu0 %v696
      %702 = vmatprep.subr.bf16.mxu0 0
      %703 = vmatpush1.bf16.msra.mxu0 %v697
      %704 = vmatprep.subr.bf16.mxu0 0
      %705 = vmatpush1.bf16.msra.mxu0 %v698
      %706 = vmatprep.subr.bf16.mxu0 0
      %707 = vmatpush1.bf16.msra.mxu0 %v699
      %708 = vmatprep.subr.bf16.mxu0 0
      %709 = vmatpush1.bf16.msra.mxu0 0
      %710 = vmatprep.subr.bf16.mxu0 0
      %711 = vmatpush1.bf16.msra.mxu0 0
      %712 = vmatprep.subr.bf16.mxu0 0
      %713 = vmatpush1.bf16.msra.mxu0 0
      %714 = vmatprep.subr.bf16.mxu0 0
      %715 = vmatpush1.bf16.msra.mxu0 0
      %716 = vmatprep.subr.bf16.mxu0 0
      %717 = vmatpush1.bf16.msra.mxu0 0
      %718 = vmatprep.subr.bf16.mxu0 0
      %719 = vmatpush1.bf16.msra.mxu0 0
      %720 = vmatprep.subr.bf16.mxu0 0
      %721 = vmatpush1.bf16.msra.mxu0 0
      %722 = vmatprep.subr.bf16.mxu0 0
      %723 = vmatpush1.bf16.msra.mxu0 0
      %724 = vmatprep.subr.bf16.mxu0 0
      %725 = vmatpush1.bf16.msra.mxu0 0
      %726 = vmatprep.subr.bf16.mxu0 0
      %727 = vmatpush1.bf16.msra.mxu0 0
      %728 = vmatprep.subr.bf16.mxu0 0
      %729 = vmatpush1.bf16.msra.mxu0 0
      %730 = vmatprep.subr.bf16.mxu0 0
      %731 = vmatpush1.bf16.msra.mxu0 0
      %732 = vmatprep.mubr.bf16.mxu0 0
      %733 = vmatmul.mubr.bf16.gmra.mrb[0].mxu0 %v434
      %v734 = vpop.f32.mrb[0].mxu0
      %v735 = vadd.f32 -768.0, %v734
      %v736 = vpop.f32.mrb[0].mxu0
      %v737 = vpop.f32.mrb[0].mxu0
      %v738 = vpop.f32.mrb[0].mxu0
      %739 = vdwg.mxu0
      %v740 = vmax.bf16 %v424, 1093681456
      %v741 = vmax.bf16 %v425, 1093681456
      %v742 = vmax.bf16 %v426, 1093681456
      %v743 = vmax.bf16 %v427, 1093681456
      %744 = vmatprep.subr.bf16.mxu0 0
      %745 = vmatpush1.bf16.msra.mxu0 %v740
      %746 = vmatprep.subr.bf16.mxu0 0
      %747 = vmatpush1.bf16.msra.mxu0 %v741
      %748 = vmatprep.subr.bf16.mxu0 0
      %749 = vmatpush1.bf16.msra.mxu0 %v742
      %750 = vmatprep.subr.bf16.mxu0 0
      %751 = vmatpush1.bf16.msra.mxu0 %v743
      %752 = vmatprep.subr.bf16.mxu0 0
      %753 = vmatpush1.bf16.msra.mxu0 0
      %754 = vmatprep.subr.bf16.mxu0 0
      %755 = vmatpush1.bf16.msra.mxu0 0
      %756 = vmatprep.subr.bf16.mxu0 0
      %757 = vmatpush1.bf16.msra.mxu0 0
      %758 = vmatprep.subr.bf16.mxu0 0
      %759 = vmatpush1.bf16.msra.mxu0 0
      %760 = vmatprep.subr.bf16.mxu0 0
      %761 = vmatpush1.bf16.msra.mxu0 0
      %762 = vmatprep.subr.bf16.mxu0 0
      %763 = vmatpush1.bf16.msra.mxu0 0
      %764 = vmatprep.subr.bf16.mxu0 0
      %765 = vmatpush1.bf16.msra.mxu0 0
      %766 = vmatprep.subr.bf16.mxu0 0
      %767 = vmatpush1.bf16.msra.mxu0 0
      %768 = vmatprep.subr.bf16.mxu0 0
      %769 = vmatpush1.bf16.msra.mxu0 0
      %770 = vmatprep.subr.bf16.mxu0 0
      %771 = vmatpush1.bf16.msra.mxu0 0
      %772 = vmatprep.subr.bf16.mxu0 0
      %773 = vmatpush1.bf16.msra.mxu0 0
      %774 = vmatprep.subr.bf16.mxu0 0
      %775 = vmatpush1.bf16.msra.mxu0 0
      %776 = vmatprep.mubr.bf16.mxu0 0
      %777 = vmatmul.mubr.bf16.gmra.mrb[0].mxu0 %v434
      %v778 = vpop.f32.mrb[0].mxu0
      %v779 = vadd.f32 -704.0, %v778
      %v780 = vpop.f32.mrb[0].mxu0
      %v781 = vpop.f32.mrb[0].mxu0
      %v782 = vpop.f32.mrb[0].mxu0
      %783 = vdwg.mxu0
      %v784 = vmax.bf16 %v424, 1092632864
      %v785 = vmax.bf16 %v425, 1092632864
      %v786 = vmax.bf16 %v426, 1092632864
      %v787 = vmax.bf16 %v427, 1092632864
      %788 = vmatprep.subr.bf16.mxu0 0
      %789 = vmatpush1.bf16.msra.mxu0 %v784
      %790 = vmatprep.subr.bf16.mxu0 0
      %791 = vmatpush1.bf16.msra.mxu0 %v785
      %792 = vmatprep.subr.bf16.mxu0 0
      %793 = vmatpush1.bf16.msra.mxu0 %v786
      %794 = vmatprep.subr.bf16.mxu0 0
      %795 = vmatpush1.bf16.msra.mxu0 %v787
      %796 = vmatprep.subr.bf16.mxu0 0
      %797 = vmatpush1.bf16.msra.mxu0 0
      %798 = vmatprep.subr.bf16.mxu0 0
      %799 = vmatpush1.bf16.msra.mxu0 0
      %800 = vmatprep.subr.bf16.mxu0 0
      %801 = vmatpush1.bf16.msra.mxu0 0
      %802 = vmatprep.subr.bf16.mxu0 0
      %803 = vmatpush1.bf16.msra.mxu0 0
      %804 = vmatprep.subr.bf16.mxu0 0
      %805 = vmatpush1.bf16.msra.mxu0 0
      %806 = vmatprep.subr.bf16.mxu0 0
      %807 = vmatpush1.bf16.msra.mxu0 0
      %808 = vmatprep.subr.bf16.mxu0 0
      %809 = vmatpush1.bf16.msra.mxu0 0
      %810 = vmatprep.subr.bf16.mxu0 0
      %811 = vmatpush1.bf16.msra.mxu0 0
      %812 = vmatprep.subr.bf16.mxu0 0
      %813 = vmatpush1.bf16.msra.mxu0 0
      %814 = vmatprep.subr.bf16.mxu0 0
      %815 = vmatpush1.bf16.msra.mxu0 0
      %816 = vmatprep.subr.bf16.mxu0 0
      %817 = vmatpush1.bf16.msra.mxu0 0
      %818 = vmatprep.subr.bf16.mxu0 0
      %819 = vmatpush1.bf16.msra.mxu0 0
      %820 = vmatprep.mubr.bf16.mxu0 0
      %821 = vmatmul.mubr.bf16.gmra.mrb[0].mxu0 %v434
      %v822 = vpop.f32.mrb[0].mxu0
      %v823 = vadd.f32 -640.0, %v822
      %v824 = vpop.f32.mrb[0].mxu0
      %v825 = vpop.f32.mrb[0].mxu0
      %v826 = vpop.f32.mrb[0].mxu0
      %827 = vdwg.mxu0
      %v828 = vmax.bf16 %v424, 1091584272
      %v829 = vmax.bf16 %v425, 1091584272
      %v830 = vmax.bf16 %v426, 1091584272
      %v831 = vmax.bf16 %v427, 1091584272
      %832 = vmatprep.subr.bf16.mxu0 0
      %833 = vmatpush1.bf16.msra.mxu0 %v828
      %834 = vmatprep.subr.bf16.mxu0 0
      %835 = vmatpush1.bf16.msra.mxu0 %v829
      %836 = vmatprep.subr.bf16.mxu0 0
      %837 = vmatpush1.bf16.msra.mxu0 %v830
      %838 = vmatprep.subr.bf16.mxu0 0
      %839 = vmatpush1.bf16.msra.mxu0 %v831
      %840 = vmatprep.subr.bf16.mxu0 0
      %841 = vmatpush1.bf16.msra.mxu0 0
      %842 = vmatprep.subr.bf16.mxu0 0
      %843 = vmatpush1.bf16.msra.mxu0 0
      %844 = vmatprep.subr.bf16.mxu0 0
      %845 = vmatpush1.bf16.msra.mxu0 0
      %846 = vmatprep.subr.bf16.mxu0 0
      %847 = vmatpush1.bf16.msra.mxu0 0
      %848 = vmatprep.subr.bf16.mxu0 0
      %849 = vmatpush1.bf16.msra.mxu0 0
      %850 = vmatprep.subr.bf16.mxu0 0
      %851 = vmatpush1.bf16.msra.mxu0 0
      %852 = vmatprep.subr.bf16.mxu0 0
      %853 = vmatpush1.bf16.msra.mxu0 0
      %854 = vmatprep.subr.bf16.mxu0 0
      %855 = vmatpush1.bf16.msra.mxu0 0
      %856 = vmatprep.subr.bf16.mxu0 0
      %857 = vmatpush1.bf16.msra.mxu0 0
      %858 = vmatprep.subr.bf16.mxu0 0
      %859 = vmatpush1.bf16.msra.mxu0 0
      %860 = vmatprep.subr.bf16.mxu0 0
      %861 = vmatpush1.bf16.msra.mxu0 0
      %862 = vmatprep.subr.bf16.mxu0 0
      %863 = vmatpush1.bf16.msra.mxu0 0
      %864 = vmatprep.mubr.bf16.mxu0 0
      %865 = vmatmul.mubr.bf16.gmra.mrb[0].mxu0 %v434
      %v866 = vpop.f32.mrb[0].mxu0
      %v867 = vadd.f32 -576.0, %v866
      %v868 = vpop.f32.mrb[0].mxu0
      %v869 = vpop.f32.mrb[0].mxu0
      %v870 = vpop.f32.mrb[0].mxu0
      %871 = vdwg.mxu0
      %v872 = vmax.bf16 %v424, 1090535680
      %v873 = vmax.bf16 %v425, 1090535680
      %v874 = vmax.bf16 %v426, 1090535680
      %v875 = vmax.bf16 %v427, 1090535680
      %876 = vmatprep.subr.bf16.mxu0 0
      %877 = vmatpush1.bf16.msra.mxu0 %v872
      %878 = vmatprep.subr.bf16.mxu0 0
      %879 = vmatpush1.bf16.msra.mxu0 %v873
      %880 = vmatprep.subr.bf16.mxu0 0
      %881 = vmatpush1.bf16.msra.mxu0 %v874
      %882 = vmatprep.subr.bf16.mxu0 0
      %883 = vmatpush1.bf16.msra.mxu0 %v875
      %884 = vmatprep.subr.bf16.mxu0 0
      %885 = vmatpush1.bf16.msra.mxu0 0
      %886 = vmatprep.subr.bf16.mxu0 0
      %887 = vmatpush1.bf16.msra.mxu0 0
      %888 = vmatprep.subr.bf16.mxu0 0
      %889 = vmatpush1.bf16.msra.mxu0 0
      %890 = vmatprep.subr.bf16.mxu0 0
      %891 = vmatpush1.bf16.msra.mxu0 0
      %892 = vmatprep.subr.bf16.mxu0 0
      %893 = vmatpush1.bf16.msra.mxu0 0
      %894 = vmatprep.subr.bf16.mxu0 0
      %895 = vmatpush1.bf16.msra.mxu0 0
      %896 = vmatprep.subr.bf16.mxu0 0
      %897 = vmatpush1.bf16.msra.mxu0 0
      %898 = vmatprep.subr.bf16.mxu0 0
      %899 = vmatpush1.bf16.msra.mxu0 0
      %900 = vmatprep.subr.bf16.mxu0 0
      %901 = vmatpush1.bf16.msra.mxu0 0
      %902 = vmatprep.subr.bf16.mxu0 0
      %903 = vmatpush1.bf16.msra.mxu0 0
      %904 = vmatprep.subr.bf16.mxu0 0
      %905 = vmatpush1.bf16.msra.mxu0 0
      %906 = vmatprep.subr.bf16.mxu0 0
      %907 = vmatpush1.bf16.msra.mxu0 0
      %908 = vmatprep.mubr.bf16.mxu0 0
      %909 = vmatmul.mubr.bf16.gmra.mrb[0].mxu0 %v434
      %v910 = vpop.f32.mrb[0].mxu0
      %v911 = vadd.f32 -512.0, %v910
      %v912 = vpop.f32.mrb[0].mxu0
      %v913 = vpop.f32.mrb[0].mxu0
      %v914 = vpop.f32.mrb[0].mxu0
      %915 = vdwg.mxu0
      %v916 = vmax.bf16 %v424, 1088438496
      %v917 = vmax.bf16 %v425, 1088438496
      %v918 = vmax.bf16 %v426, 1088438496
      %v919 = vmax.bf16 %v427, 1088438496
      %920 = vmatprep.subr.bf16.mxu0 0
      %921 = vmatpush1.bf16.msra.mxu0 %v916
      %922 = vmatprep.subr.bf16.mxu0 0
      %923 = vmatpush1.bf16.msra.mxu0 %v917
      %924 = vmatprep.subr.bf16.mxu0 0
      %925 = vmatpush1.bf16.msra.mxu0 %v918
      %926 = vmatprep.subr.bf16.mxu0 0
      %927 = vmatpush1.bf16.msra.mxu0 %v919
      %928 = vmatprep.subr.bf16.mxu0 0
      %929 = vmatpush1.bf16.msra.mxu0 0
      %930 = vmatprep.subr.bf16.mxu0 0
      %931 = vmatpush1.bf16.msra.mxu0 0
      %932 = vmatprep.subr.bf16.mxu0 0
      %933 = vmatpush1.bf16.msra.mxu0 0
      %934 = vmatprep.subr.bf16.mxu0 0
      %935 = vmatpush1.bf16.msra.mxu0 0
      %936 = vmatprep.subr.bf16.mxu0 0
      %937 = vmatpush1.bf16.msra.mxu0 0
      %938 = vmatprep.subr.bf16.mxu0 0
      %939 = vmatpush1.bf16.msra.mxu0 0
      %940 = vmatprep.subr.bf16.mxu0 0
      %941 = vmatpush1.bf16.msra.mxu0 0
      %942 = vmatprep.subr.bf16.mxu0 0
      %943 = vmatpush1.bf16.msra.mxu0 0
      %944 = vmatprep.subr.bf16.mxu0 0
      %945 = vmatpush1.bf16.msra.mxu0 0
      %946 = vmatprep.subr.bf16.mxu0 0
      %947 = vmatpush1.bf16.msra.mxu0 0
      %948 = vmatprep.subr.bf16.mxu0 0
      %949 = vmatpush1.bf16.msra.mxu0 0
      %950 = vmatprep.subr.bf16.mxu0 0
      %951 = vmatpush1.bf16.msra.mxu0 0
      %952 = vmatprep.mubr.bf16.mxu0 0
      %953 = vmatmul.mubr.bf16.gmra.mrb[0].mxu0 %v434
      %v954 = vpop.f32.mrb[0].mxu0
      %v955 = vadd.f32 -448.0, %v954
      %v956 = vpop.f32.mrb[0].mxu0
      %v957 = vpop.f32.mrb[0].mxu0
      %v958 = vpop.f32.mrb[0].mxu0
      %959 = vdwg.mxu0
      %v960 = vmax.bf16 %v424, 1086341312
      %v961 = vmax.bf16 %v425, 1086341312
      %v962 = vmax.bf16 %v426, 1086341312
      %v963 = vmax.bf16 %v427, 1086341312
      %964 = vmatprep.subr.bf16.mxu0 0
      %965 = vmatpush1.bf16.msra.mxu0 %v960
      %966 = vmatprep.subr.bf16.mxu0 0
      %967 = vmatpush1.bf16.msra.mxu0 %v961
      %968 = vmatprep.subr.bf16.mxu0 0
      %969 = vmatpush1.bf16.msra.mxu0 %v962
      %970 = vmatprep.subr.bf16.mxu0 0
      %971 = vmatpush1.bf16.msra.mxu0 %v963
      %972 = vmatprep.subr.bf16.mxu0 0
      %973 = vmatpush1.bf16.msra.mxu0 0
      %974 = vmatprep.subr.bf16.mxu0 0
      %975 = vmatpush1.bf16.msra.mxu0 0
      %976 = vmatprep.subr.bf16.mxu0 0
      %977 = vmatpush1.bf16.msra.mxu0 0
      %978 = vmatprep.subr.bf16.mxu0 0
      %979 = vmatpush1.bf16.msra.mxu0 0
      %980 = vmatprep.subr.bf16.mxu0 0
      %981 = vmatpush1.bf16.msra.mxu0 0
      %982 = vmatprep.subr.bf16.mxu0 0
      %983 = vmatpush1.bf16.msra.mxu0 0
      %984 = vmatprep.subr.bf16.mxu0 0
      %985 = vmatpush1.bf16.msra.mxu0 0
      %986 = vmatprep.subr.bf16.mxu0 0
      %987 = vmatpush1.bf16.msra.mxu0 0
      %988 = vmatprep.subr.bf16.mxu0 0
      %989 = vmatpush1.bf16.msra.mxu0 0
      %990 = vmatprep.subr.bf16.mxu0 0
      %991 = vmatpush1.bf16.msra.mxu0 0
      %992 = vmatprep.subr.bf16.mxu0 0
      %993 = vmatpush1.bf16.msra.mxu0 0
      %994 = vmatprep.subr.bf16.mxu0 0
      %995 = vmatpush1.bf16.msra.mxu0 0
      %996 = vmatprep.mubr.bf16.mxu0 0
      %997 = vmatmul.mubr.bf16.gmra.mrb[0].mxu0 %v434
      %v998 = vpop.f32.mrb[0].mxu0
      %v999 = vadd.f32 -384.0, %v998
      %v1000 = vpop.f32.mrb[0].mxu0
      %v1001 = vpop.f32.mrb[0].mxu0
      %v1002 = vpop.f32.mrb[0].mxu0
      %1003 = vdwg.mxu0
      %v1004 = vmax.bf16 %v424, 1084244128
      %v1005 = vmax.bf16 %v425, 1084244128
      %v1006 = vmax.bf16 %v426, 1084244128
      %v1007 = vmax.bf16 %v427, 1084244128
      %1008 = vmatprep.subr.bf16.mxu0 0
      %1009 = vmatpush1.bf16.msra.mxu0 %v1004
      %1010 = vmatprep.subr.bf16.mxu0 0
      %1011 = vmatpush1.bf16.msra.mxu0 %v1005
      %1012 = vmatprep.subr.bf16.mxu0 0
      %1013 = vmatpush1.bf16.msra.mxu0 %v1006
      %1014 = vmatprep.subr.bf16.mxu0 0
      %1015 = vmatpush1.bf16.msra.mxu0 %v1007
      %1016 = vmatprep.subr.bf16.mxu0 0
      %1017 = vmatpush1.bf16.msra.mxu0 0
      %1018 = vmatprep.subr.bf16.mxu0 0
      %1019 = vmatpush1.bf16.msra.mxu0 0
      %1020 = vmatprep.subr.bf16.mxu0 0
      %1021 = vmatpush1.bf16.msra.mxu0 0
      %1022 = vmatprep.subr.bf16.mxu0 0
      %1023 = vmatpush1.bf16.msra.mxu0 0
      %1024 = vmatprep.subr.bf16.mxu0 0
      %1025 = vmatpush1.bf16.msra.mxu0 0
      %1026 = vmatprep.subr.bf16.mxu0 0
      %1027 = vmatpush1.bf16.msra.mxu0 0
      %1028 = vmatprep.subr.bf16.mxu0 0
      %1029 = vmatpush1.bf16.msra.mxu0 0
      %1030 = vmatprep.subr.bf16.mxu0 0
      %1031 = vmatpush1.bf16.msra.mxu0 0
      %1032 = vmatprep.subr.bf16.mxu0 0
      %1033 = vmatpush1.bf16.msra.mxu0 0
      %1034 = vmatprep.subr.bf16.mxu0 0
      %1035 = vmatpush1.bf16.msra.mxu0 0
      %1036 = vmatprep.subr.bf16.mxu0 0
      %1037 = vmatpush1.bf16.msra.mxu0 0
      %1038 = vmatprep.subr.bf16.mxu0 0
      %1039 = vmatpush1.bf16.msra.mxu0 0
      %1040 = vmatprep.mubr.bf16.mxu0 0
      %1041 = vmatmul.mubr.bf16.gmra.mrb[0].mxu0 %v434
      %v1042 = vpop.f32.mrb[0].mxu0
      %v1043 = vadd.f32 -320.0, %v1042
      %v1044 = vpop.f32.mrb[0].mxu0
      %v1045 = vpop.f32.mrb[0].mxu0
      %v1046 = vpop.f32.mrb[0].mxu0
      %1047 = vdwg.mxu0
      %v1048 = vmax.bf16 %v424, 1082146944
      %v1049 = vmax.bf16 %v425, 1082146944
      %v1050 = vmax.bf16 %v426, 1082146944
      %v1051 = vmax.bf16 %v427, 1082146944
      %1052 = vmatprep.subr.bf16.mxu0 0
      %1053 = vmatpush1.bf16.msra.mxu0 %v1048
      %1054 = vmatprep.subr.bf16.mxu0 0
      %1055 = vmatpush1.bf16.msra.mxu0 %v1049
      %1056 = vmatprep.subr.bf16.mxu0 0
      %1057 = vmatpush1.bf16.msra.mxu0 %v1050
      %1058 = vmatprep.subr.bf16.mxu0 0
      %1059 = vmatpush1.bf16.msra.mxu0 %v1051
      %1060 = vmatprep.subr.bf16.mxu0 0
      %1061 = vmatpush1.bf16.msra.mxu0 0
      %1062 = vmatprep.subr.bf16.mxu0 0
      %1063 = vmatpush1.bf16.msra.mxu0 0
      %1064 = vmatprep.subr.bf16.mxu0 0
      %1065 = vmatpush1.bf16.msra.mxu0 0
      %1066 = vmatprep.subr.bf16.mxu0 0
      %1067 = vmatpush1.bf16.msra.mxu0 0
      %1068 = vmatprep.subr.bf16.mxu0 0
      %1069 = vmatpush1.bf16.msra.mxu0 0
      %1070 = vmatprep.subr.bf16.mxu0 0
      %1071 = vmatpush1.bf16.msra.mxu0 0
      %1072 = vmatprep.subr.bf16.mxu0 0
      %1073 = vmatpush1.bf16.msra.mxu0 0
      %1074 = vmatprep.subr.bf16.mxu0 0
      %1075 = vmatpush1.bf16.msra.mxu0 0
      %1076 = vmatprep.subr.bf16.mxu0 0
      %1077 = vmatpush1.bf16.msra.mxu0 0
      %1078 = vmatprep.subr.bf16.mxu0 0
      %1079 = vmatpush1.bf16.msra.mxu0 0
      %1080 = vmatprep.subr.bf16.mxu0 0
      %1081 = vmatpush1.bf16.msra.mxu0 0
      %1082 = vmatprep.subr.bf16.mxu0 0
      %1083 = vmatpush1.bf16.msra.mxu0 0
      %1084 = vmatprep.mubr.bf16.mxu0 0
      %1085 = vmatmul.mubr.bf16.gmra.mrb[0].mxu0 %v434
      %v1086 = vpop.f32.mrb[0].mxu0
      %v1087 = vadd.f32 -256.0, %v1086
      %v1088 = vpop.f32.mrb[0].mxu0
      %v1089 = vpop.f32.mrb[0].mxu0
      %v1090 = vpop.f32.mrb[0].mxu0
      %1091 = vdwg.mxu0
      %v1092 = vmax.bf16 %v424, 1077952576
      %v1093 = vmax.bf16 %v425, 1077952576
      %v1094 = vmax.bf16 %v426, 1077952576
      %v1095 = vmax.bf16 %v427, 1077952576
      %1096 = vmatprep.subr.bf16.mxu0 0
      %1097 = vmatpush1.bf16.msra.mxu0 %v1092
      %1098 = vmatprep.subr.bf16.mxu0 0
      %1099 = vmatpush1.bf16.msra.mxu0 %v1093
      %1100 = vmatprep.subr.bf16.mxu0 0
      %1101 = vmatpush1.bf16.msra.mxu0 %v1094
      %1102 = vmatprep.subr.bf16.mxu0 0
      %1103 = vmatpush1.bf16.msra.mxu0 %v1095
      %1104 = vmatprep.subr.bf16.mxu0 0
      %1105 = vmatpush1.bf16.msra.mxu0 0
      %1106 = vmatprep.subr.bf16.mxu0 0
      %1107 = vmatpush1.bf16.msra.mxu0 0
      %1108 = vmatprep.subr.bf16.mxu0 0
      %1109 = vmatpush1.bf16.msra.mxu0 0
      %1110 = vmatprep.subr.bf16.mxu0 0
      %1111 = vmatpush1.bf16.msra.mxu0 0
      %1112 = vmatprep.subr.bf16.mxu0 0
      %1113 = vmatpush1.bf16.msra.mxu0 0
      %1114 = vmatprep.subr.bf16.mxu0 0
      %1115 = vmatpush1.bf16.msra.mxu0 0
      %1116 = vmatprep.subr.bf16.mxu0 0
      %1117 = vmatpush1.bf16.msra.mxu0 0
      %1118 = vmatprep.subr.bf16.mxu0 0
      %1119 = vmatpush1.bf16.msra.mxu0 0
      %1120 = vmatprep.subr.bf16.mxu0 0
      %1121 = vmatpush1.bf16.msra.mxu0 0
      %1122 = vmatprep.subr.bf16.mxu0 0
      %1123 = vmatpush1.bf16.msra.mxu0 0
      %1124 = vmatprep.subr.bf16.mxu0 0
      %1125 = vmatpush1.bf16.msra.mxu0 0
      %1126 = vmatprep.subr.bf16.mxu0 0
      %1127 = vmatpush1.bf16.msra.mxu0 0
      %1128 = vmatprep.mubr.bf16.mxu0 0
      %1129 = vmatmul.mubr.bf16.gmra.mrb[0].mxu0 %v434
      %v1130 = vpop.f32.mrb[0].mxu0
      %v1131 = vadd.f32 -192.0, %v1130
      %v1132 = vpop.f32.mrb[0].mxu0
      %v1133 = vpop.f32.mrb[0].mxu0
      %v1134 = vpop.f32.mrb[0].mxu0
      %1135 = vdwg.mxu0
      %v1136 = vmax.bf16 %v424, 1073758208
      %v1137 = vmax.bf16 %v425, 1073758208
      %v1138 = vmax.bf16 %v426, 1073758208
      %v1139 = vmax.bf16 %v427, 1073758208
      %1140 = vmatprep.subr.bf16.mxu0 0
      %1141 = vmatpush1.bf16.msra.mxu0 %v1136
      %1142 = vmatprep.subr.bf16.mxu0 0
      %1143 = vmatpush1.bf16.msra.mxu0 %v1137
      %1144 = vmatprep.subr.bf16.mxu0 0
      %1145 = vmatpush1.bf16.msra.mxu0 %v1138
      %1146 = vmatprep.subr.bf16.mxu0 0
      %1147 = vmatpush1.bf16.msra.mxu0 %v1139
      %1148 = vmatprep.subr.bf16.mxu0 0
      %1149 = vmatpush1.bf16.msra.mxu0 0
      %1150 = vmatprep.subr.bf16.mxu0 0
      %1151 = vmatpush1.bf16.msra.mxu0 0
      %1152 = vmatprep.subr.bf16.mxu0 0
      %1153 = vmatpush1.bf16.msra.mxu0 0
      %1154 = vmatprep.subr.bf16.mxu0 0
      %1155 = vmatpush1.bf16.msra.mxu0 0
      %1156 = vmatprep.subr.bf16.mxu0 0
      %1157 = vmatpush1.bf16.msra.mxu0 0
      %1158 = vmatprep.subr.bf16.mxu0 0
      %1159 = vmatpush1.bf16.msra.mxu0 0
      %1160 = vmatprep.subr.bf16.mxu0 0
      %1161 = vmatpush1.bf16.msra.mxu0 0
      %1162 = vmatprep.subr.bf16.mxu0 0
      %1163 = vmatpush1.bf16.msra.mxu0 0
      %1164 = vmatprep.subr.bf16.mxu0 0
      %1165 = vmatpush1.bf16.msra.mxu0 0
      %1166 = vmatprep.subr.bf16.mxu0 0
      %1167 = vmatpush1.bf16.msra.mxu0 0
      %1168 = vmatprep.subr.bf16.mxu0 0
      %1169 = vmatpush1.bf16.msra.mxu0 0
      %1170 = vmatprep.subr.bf16.mxu0 0
      %1171 = vmatpush1.bf16.msra.mxu0 0
      %1172 = vmatprep.mubr.bf16.mxu0 0
      %1173 = vmatmul.mubr.bf16.gmra.mrb[0].mxu0 %v434
      %v1174 = vpop.f32.mrb[0].mxu0
      %v1175 = vadd.f32 -128.0, %v1174
      %v1176 = vpop.f32.mrb[0].mxu0
      %v1177 = vpop.f32.mrb[0].mxu0
      %v1178 = vpop.f32.mrb[0].mxu0
      %1179 = vdwg.mxu0
      %v1180 = vmax.bf16 %v424, 1065369472
      %v1181 = vmax.bf16 %v425, 1065369472
      %v1182 = vmax.bf16 %v426, 1065369472
      %v1183 = vmax.bf16 %v427, 1065369472
      %1184 = vmatprep.subr.bf16.mxu0 0
      %1185 = vmatpush1.bf16.msra.mxu0 %v1180
      %1186 = vmatprep.subr.bf16.mxu0 0
      %1187 = vmatpush1.bf16.msra.mxu0 %v1181
      %1188 = vmatprep.subr.bf16.mxu0 0
      %1189 = vmatpush1.bf16.msra.mxu0 %v1182
      %1190 = vmatprep.subr.bf16.mxu0 0
      %1191 = vmatpush1.bf16.msra.mxu0 %v1183
      %1192 = vmatprep.subr.bf16.mxu0 0
      %1193 = vmatpush1.bf16.msra.mxu0 0
      %1194 = vmatprep.subr.bf16.mxu0 0
      %1195 = vmatpush1.bf16.msra.mxu0 0
      %1196 = vmatprep.subr.bf16.mxu0 0
      %1197 = vmatpush1.bf16.msra.mxu0 0
      %1198 = vmatprep.subr.bf16.mxu0 0
      %1199 = vmatpush1.bf16.msra.mxu0 0
      %1200 = vmatprep.subr.bf16.mxu0 0
      %1201 = vmatpush1.bf16.msra.mxu0 0
      %1202 = vmatprep.subr.bf16.mxu0 0
      %1203 = vmatpush1.bf16.msra.mxu0 0
      %1204 = vmatprep.subr.bf16.mxu0 0
      %1205 = vmatpush1.bf16.msra.mxu0 0
      %1206 = vmatprep.subr.bf16.mxu0 0
      %1207 = vmatpush1.bf16.msra.mxu0 0
      %1208 = vmatprep.subr.bf16.mxu0 0
      %1209 = vmatpush1.bf16.msra.mxu0 0
      %1210 = vmatprep.subr.bf16.mxu0 0
      %1211 = vmatpush1.bf16.msra.mxu0 0
      %1212 = vmatprep.subr.bf16.mxu0 0
      %1213 = vmatpush1.bf16.msra.mxu0 0
      %1214 = vmatprep.subr.bf16.mxu0 0
      %1215 = vmatpush1.bf16.msra.mxu0 0
      %1216 = vmatprep.mubr.bf16.mxu0 0
      %1217 = vmatmul.mubr.bf16.gmra.mrb[0].mxu0 %v434
      %v1218 = vpop.f32.mrb[0].mxu0
      %v1219 = vadd.f32 -64.0, %v1218
      %v1220 = vpop.f32.mrb[0].mxu0
      %v1221 = vpop.f32.mrb[0].mxu0
      %v1222 = vpop.f32.mrb[0].mxu0
      %1223 = vdwg.mxu0
      %v1224 = vmax.bf16 %v424, 0
      %v1225 = vmax.bf16 %v425, 0
      %v1226 = vmax.bf16 %v426, 0
      %v1227 = vmax.bf16 %v427, 0
      %1228 = vmatprep.subr.bf16.mxu0 0
      %1229 = vmatpush1.bf16.msra.mxu0 %v1224
      %1230 = vmatprep.subr.bf16.mxu0 0
      %1231 = vmatpush1.bf16.msra.mxu0 %v1225
      %1232 = vmatprep.subr.bf16.mxu0 0
      %1233 = vmatpush1.bf16.msra.mxu0 %v1226
      %1234 = vmatprep.subr.bf16.mxu0 0
      %1235 = vmatpush1.bf16.msra.mxu0 %v1227
      %1236 = vmatprep.subr.bf16.mxu0 0
      %1237 = vmatpush1.bf16.msra.mxu0 0
      %1238 = vmatprep.subr.bf16.mxu0 0
      %1239 = vmatpush1.bf16.msra.mxu0 0
      %1240 = vmatprep.subr.bf16.mxu0 0
      %1241 = vmatpush1.bf16.msra.mxu0 0
      %1242 = vmatprep.subr.bf16.mxu0 0
      %1243 = vmatpush1.bf16.msra.mxu0 0
      %1244 = vmatprep.subr.bf16.mxu0 0
      %1245 = vmatpush1.bf16.msra.mxu0 0
      %1246 = vmatprep.subr.bf16.mxu0 0
      %1247 = vmatpush1.bf16.msra.mxu0 0
      %1248 = vmatprep.subr.bf16.mxu0 0
      %1249 = vmatpush1.bf16.msra.mxu0 0
      %1250 = vmatprep.subr.bf16.mxu0 0
      %1251 = vmatpush1.bf16.msra.mxu0 0
      %1252 = vmatprep.subr.bf16.mxu0 0
      %1253 = vmatpush1.bf16.msra.mxu0 0
      %1254 = vmatprep.subr.bf16.mxu0 0
      %1255 = vmatpush1.bf16.msra.mxu0 0
      %1256 = vmatprep.subr.bf16.mxu0 0
      %1257 = vmatpush1.bf16.msra.mxu0 0
      %1258 = vmatprep.subr.bf16.mxu0 0
      %1259 = vmatpush1.bf16.msra.mxu0 0
      %1260 = vmatprep.mubr.bf16.mxu0 0
      %1261 = vmatmul.mubr.bf16.gmra.mrb[0].mxu0 %v434
      %v1262 = vpop.f32.mrb[0].mxu0
      %v1263 = vadd.f32 0.0, %v1262
      %v1264 = vpop.f32.mrb[0].mxu0
      %v1265 = vpop.f32.mrb[0].mxu0
      %v1266 = vpop.f32.mrb[0].mxu0
      %1267 = vdwg.mxu0
      %v1268 = vld [vmem:[#allocation2] sm:$0xff]
      %v1269 = vld [vmem:[#allocation2 + $0x8] sm:$0xff]
      %v1270 = vld [vmem:[#allocation2 + $0x10] sm:$0x7]
      %v1272 = vrot.slane %v515, 7
      %v1275 = vrot.slane %v559, 6
      %v1278 = vrot.slane %v603, 5
      %v1281 = vrot.slane %v647, 4
      %v1284 = vrot.slane %v691, 3
      %v1287 = vrot.slane %v735, 2
      %v1290 = vrot.slane %v779, 1
      %v1293 = vrot.slane %v867, 7
      %v1296 = vrot.slane %v911, 6
      %v1299 = vrot.slane %v955, 5
      %v1302 = vrot.slane %v999, 4
      %v1305 = vrot.slane %v1043, 3
      %v1308 = vrot.slane %v1087, 2
      %v1311 = vrot.slane %v1131, 1
      %vm1313 = vcmask 1040384
      %v1314 = vsel %vm1313, %v471, %v1272
      %vm1315 = vcmask 1041408
      %v1316 = vsel %vm1315, %v1314, %v1275
      %vm1317 = vcmask 1042432
      %v1318 = vsel %vm1317, %v1316, %v1278
      %vm1319 = vcmask 1043456
      %v1320 = vsel %vm1319, %v1318, %v1281
      %vm1321 = vcmask 1044480
      %v1322 = vsel %vm1321, %v1320, %v1284
      %vm1323 = vcmask 1045504
      %v1324 = vsel %vm1323, %v1322, %v1287
      %vm1325 = vcmask 1046528
      %v1326 = vsel %vm1325, %v1324, %v1290
      %v1327 = vsel %vm1313, %v823, %v1293
      %v1328 = vsel %vm1315, %v1327, %v1296
      %v1329 = vsel %vm1317, %v1328, %v1299
      %v1330 = vsel %vm1319, %v1329, %v1302
      %v1331 = vsel %vm1321, %v1330, %v1305
      %v1332 = vsel %vm1323, %v1331, %v1308
      %v1333 = vsel %vm1325, %v1332, %v1311
      %v1335 = vrot.slane %v1219, 7
      %v1338 = vrot.slane %v1263, 6
      %v1340 = vsel %vm1313, %v1175, %v1335
      %v1341 = vsel %vm1315, %v1340, %v1338
      %v1342 = vadd.f32 %v1268, %v1326
      %v1343 = vadd.f32 %v1269, %v1333
      %v1344 = vadd.f32 %v1270, %v1341
      %1345 = vst.msk [vmem:[#allocation2] sm:$0xff] %vm432, %v1342
      %1346 = vst.msk [vmem:[#allocation2 + $0x8] sm:$0xff] %vm432, %v1343
      %vm1347 = vcmask 518144
      %1348 = vst.msk [vmem:[#allocation2 + $0x10] sm:$0x7] %vm1347, %v1344
      // Predicated region
      $region37: #{custom_pixel_ap_loss.1} parent=31 // pred_check
        %p1349 = pneg %p285
      $region38: #{custom_pixel_ap_loss.1} parent=31 // pred_check_branch
        %1351 = sbr.rel (%p1349) target = $region40
      $region39: #{custom_pixel_ap_loss.1} parent=31 // pred_region
        %v1352 = vld [vmem:[%s241] sm:$0x1]
        %v1353 = vld [vmem:[#allocation2] sm:$0xff]
        %v1354 = vld [vmem:[#allocation2 + $0x8] sm:$0xff]
        %v1355 = vld [vmem:[#allocation2 + $0x10] sm:$0x7]
        %v1356 = vmax.f32 %v1353, 0.0
        %v1357 = vadd.f32 %v1352, -18.0
        %v1358 = vmax.f32 %v1357, 0.0
        %v1359 = vmin.f32 %v1358, 1.0
        %v1360 = vadd.f32 %v1356, 1e-16
        %v1361 = vrcp.pop %v1360
        %v1362 = vmul.f32 %v1359, %v1361
        %v1363 = vmin.f32 %v1362, 1.0
        %v1364 = vmul.f32 %v1363, %v1359
        %v1365 = vadd.f32 %v1364, 0.0
        %v1367 = vrot.slane %v1353, 7
        %v1369 = vsub.f32 %v1353, %v1367
        %v1370 = vmax.f32 %v1369, 0.0
        %v1371 = vadd.f32 %v1352, -17.0
        %v1372 = vmax.f32 %v1371, 0.0
        %v1373 = vmin.f32 %v1372, 1.0
        %v1374 = vsub.f32 %v1373, %v1359
        %v1375 = vadd.f32 %v1370, 1e-16
        %v1376 = vrcp.pop %v1375
        %v1379 = vunpack.c.l.s4 1966171168
        %v1380 = vunpack.c.0.s8 %v1379
        %v1381 = vlaneseq
        %v1382 = vshrl.u32 %v1381, 7
        %v1383 = vsub.s32 %v1380, %v1382
        %v1384 = vrot.slane %v1376, %v1383
        %v1385 = vcombine.high %v1384, %v1384
        %v1387 = vunpack.c.l.s4 1966171168
        %v1388 = vunpack.c.0.s8 %v1387
        %v1389 = vlaneseq
        %v1390 = vshrl.u32 %v1389, 7
        %v1391 = vsub.s32 %v1388, %v1390
        %v1392 = vrot.slane %v1384, %v1391
        %v1394 = vunpack.c.l.s4 1966171168
        %v1395 = vunpack.c.0.s8 %v1394
        %v1396 = vlaneseq
        %v1397 = vshrl.u32 %v1396, 7
        %v1398 = vsub.s32 %v1395, %v1397
        %v1399 = vrot.slane %v1385, %v1398
        %v1401 = vmul.f32 %v1373, %v1399
        %v1402 = vmin.f32 %v1401, 1.0
        %v1403 = vmul.f32 %v1402, %v1374
        %v1404 = vadd.f32 %v1365, %v1403
        %v1405 = vadd.f32 %v1352, -16.0
        %v1406 = vmax.f32 %v1405, 0.0
        %v1407 = vmin.f32 %v1406, 1.0
        %v1408 = vsub.f32 %v1407, %v1373
        %v1409 = vcombine.high %v1392, %v1392
        %v1411 = vmul.f32 %v1407, %v1409
        %v1412 = vmin.f32 %v1411, 1.0
        %v1413 = vmul.f32 %v1412, %v1408
        %v1414 = vadd.f32 %v1404, %v1413
        %v1415 = vadd.f32 %v1352, -15.0
        %v1416 = vmax.f32 %v1415, 0.0
        %v1417 = vmin.f32 %v1416, 1.0
        %v1418 = vsub.f32 %v1417, %v1407
        %v1419 = vcombine.high %v1399, %v1399
        %v1421 = vmul.f32 %v1417, %v1419
        %v1422 = vmin.f32 %v1421, 1.0
        %v1423 = vmul.f32 %v1422, %v1418
        %v1424 = vadd.f32 %v1414, %v1423
        %v1425 = vadd.f32 %v1352, -14.0
        %v1426 = vmax.f32 %v1425, 0.0
        %v1427 = vmin.f32 %v1426, 1.0
        %v1428 = vsub.f32 %v1427, %v1417
        %v1429 = vcombine.high %v1376, %v1376
        %v1431 = vunpack.c.l.s4 1966171168
        %v1432 = vunpack.c.0.s8 %v1431
        %v1433 = vlaneseq
        %v1434 = vshrl.u32 %v1433, 7
        %v1435 = vsub.s32 %v1432, %v1434
        %v1436 = vrot.slane %v1429, %v1435
        %v1438 = vunpack.c.l.s4 1966171168
        %v1439 = vunpack.c.0.s8 %v1438
        %v1440 = vlaneseq
        %v1441 = vshrl.u32 %v1440, 7
        %v1442 = vsub.s32 %v1439, %v1441
        %v1443 = vrot.slane %v1436, %v1442
        %v1445 = vmul.f32 %v1427, %v1443
        %v1446 = vmin.f32 %v1445, 1.0
        %v1447 = vmul.f32 %v1446, %v1428
        %v1448 = vadd.f32 %v1424, %v1447
        %v1449 = vadd.f32 %v1352, -13.0
        %v1450 = vmax.f32 %v1449, 0.0
        %v1451 = vmin.f32 %v1450, 1.0
        %v1452 = vsub.f32 %v1451, %v1427
        %v1453 = vcombine.high %v1436, %v1436
        %v1455 = vunpack.c.l.s4 1966171168
        %v1456 = vunpack.c.0.s8 %v1455
        %v1457 = vlaneseq
        %v1458 = vshrl.u32 %v1457, 7
        %v1459 = vsub.s32 %v1456, %v1458
        %v1460 = vrot.slane %v1453, %v1459
        %v1462 = vmul.f32 %v1451, %v1460
        %v1463 = vmin.f32 %v1462, 1.0
        %v1464 = vmul.f32 %v1463, %v1452
        %v1465 = vadd.f32 %v1448, %v1464
        %v1466 = vadd.f32 %v1352, -12.0
        %v1467 = vmax.f32 %v1466, 0.0
        %v1468 = vmin.f32 %v1467, 1.0
        %v1469 = vsub.f32 %v1468, %v1451
        %v1470 = vcombine.high %v1443, %v1443
        %v1472 = vmul.f32 %v1468, %v1470
        %v1473 = vmin.f32 %v1472, 1.0
        %v1474 = vmul.f32 %v1473, %v1469
        %v1475 = vadd.f32 %v1465, %v1474
        %v1476 = vadd.f32 %v1352, -11.0
        %v1477 = vmax.f32 %v1476, 0.0
        %v1478 = vmin.f32 %v1477, 1.0
        %v1479 = vsub.f32 %v1478, %v1468
        %v1480 = vcombine.high %v1460, %v1460
        %v1482 = vmul.f32 %v1478, %v1480
        %v1483 = vmin.f32 %v1482, 1.0
        %v1484 = vmul.f32 %v1483, %v1479
        %v1485 = vadd.f32 %v1475, %v1484
        %v1486 = vsub.f32 %v1354, %v1367
        %v1487 = vmax.f32 %v1486, 0.0
        %v1488 = vadd.f32 %v1352, -10.0
        %v1489 = vmax.f32 %v1488, 0.0
        %v1490 = vmin.f32 %v1489, 1.0
        %v1491 = vsub.f32 %v1490, %v1478
        %v1492 = vadd.f32 %v1487, 1e-16
        %v1493 = vrcp.pop %v1492
        %v1494 = vmul.f32 %v1490, %v1493
        %v1495 = vmin.f32 %v1494, 1.0
        %v1496 = vmul.f32 %v1495, %v1491
        %v1497 = vadd.f32 %v1485, %v1496
        %v1499 = vrot.slane %v1354, 7
        %v1501 = vsub.f32 %v1354, %v1499
        %v1502 = vmax.f32 %v1501, 0.0
        %v1503 = vadd.f32 %v1352, -9.0
        %v1504 = vmax.f32 %v1503, 0.0
        %v1505 = vmin.f32 %v1504, 1.0
        %v1506 = vsub.f32 %v1505, %v1490
        %v1507 = vadd.f32 %v1502, 1e-16
        %v1508 = vrcp.pop %v1507
        %v1511 = vunpack.c.l.s4 1966171168
        %v1512 = vunpack.c.0.s8 %v1511
        %v1513 = vlaneseq
        %v1514 = vshrl.u32 %v1513, 7
        %v1515 = vsub.s32 %v1512, %v1514
        %v1516 = vrot.slane %v1508, %v1515
        %v1517 = vcombine.high %v1516, %v1516
        %v1519 = vunpack.c.l.s4 1966171168
        %v1520 = vunpack.c.0.s8 %v1519
        %v1521 = vlaneseq
        %v1522 = vshrl.u32 %v1521, 7
        %v1523 = vsub.s32 %v1520, %v1522
        %v1524 = vrot.slane %v1516, %v1523
        %v1526 = vunpack.c.l.s4 1966171168
        %v1527 = vunpack.c.0.s8 %v1526
        %v1528 = vlaneseq
        %v1529 = vshrl.u32 %v1528, 7
        %v1530 = vsub.s32 %v1527, %v1529
        %v1531 = vrot.slane %v1517, %v1530
        %v1533 = vmul.f32 %v1505, %v1531
        %v1534 = vmin.f32 %v1533, 1.0
        %v1535 = vmul.f32 %v1534, %v1506
        %v1536 = vadd.f32 %v1497, %v1535
        %v1537 = vadd.f32 %v1352, -8.0
        %v1538 = vmax.f32 %v1537, 0.0
        %v1539 = vmin.f32 %v1538, 1.0
        %v1540 = vsub.f32 %v1539, %v1505
        %v1541 = vcombine.high %v1524, %v1524
        %v1543 = vmul.f32 %v1539, %v1541
        %v1544 = vmin.f32 %v1543, 1.0
        %v1545 = vmul.f32 %v1544, %v1540
        %v1546 = vadd.f32 %v1536, %v1545
        %v1547 = vadd.f32 %v1352, -7.0
        %v1548 = vmax.f32 %v1547, 0.0
        %v1549 = vmin.f32 %v1548, 1.0
        %v1550 = vsub.f32 %v1549, %v1539
        %v1551 = vcombine.high %v1531, %v1531
        %v1553 = vmul.f32 %v1549, %v1551
        %v1554 = vmin.f32 %v1553, 1.0
        %v1555 = vmul.f32 %v1554, %v1550
        %v1556 = vadd.f32 %v1546, %v1555
        %v1557 = vadd.f32 %v1352, -6.0
        %v1558 = vmax.f32 %v1557, 0.0
        %v1559 = vmin.f32 %v1558, 1.0
        %v1560 = vsub.f32 %v1559, %v1549
        %v1561 = vcombine.high %v1508, %v1508
        %v1563 = vunpack.c.l.s4 1966171168
        %v1564 = vunpack.c.0.s8 %v1563
        %v1565 = vlaneseq
        %v1566 = vshrl.u32 %v1565, 7
        %v1567 = vsub.s32 %v1564, %v1566
        %v1568 = vrot.slane %v1561, %v1567
        %v1570 = vunpack.c.l.s4 1966171168
        %v1571 = vunpack.c.0.s8 %v1570
        %v1572 = vlaneseq
        %v1573 = vshrl.u32 %v1572, 7
        %v1574 = vsub.s32 %v1571, %v1573
        %v1575 = vrot.slane %v1568, %v1574
        %v1577 = vmul.f32 %v1559, %v1575
        %v1578 = vmin.f32 %v1577, 1.0
        %v1579 = vmul.f32 %v1578, %v1560
        %v1580 = vadd.f32 %v1556, %v1579
        %v1581 = vadd.f32 %v1352, -5.0
        %v1582 = vmax.f32 %v1581, 0.0
        %v1583 = vmin.f32 %v1582, 1.0
        %v1584 = vsub.f32 %v1583, %v1559
        %v1585 = vcombine.high %v1568, %v1568
        %v1587 = vunpack.c.l.s4 1966171168
        %v1588 = vunpack.c.0.s8 %v1587
        %v1589 = vlaneseq
        %v1590 = vshrl.u32 %v1589, 7
        %v1591 = vsub.s32 %v1588, %v1590
        %v1592 = vrot.slane %v1585, %v1591
        %v1594 = vmul.f32 %v1583, %v1592
        %v1595 = vmin.f32 %v1594, 1.0
        %v1596 = vmul.f32 %v1595, %v1584
        %v1597 = vadd.f32 %v1580, %v1596
        %v1598 = vadd.f32 %v1352, -4.0
        %v1599 = vmax.f32 %v1598, 0.0
        %v1600 = vmin.f32 %v1599, 1.0
        %v1601 = vsub.f32 %v1600, %v1583
        %v1602 = vcombine.high %v1575, %v1575
        %v1604 = vmul.f32 %v1600, %v1602
        %v1605 = vmin.f32 %v1604, 1.0
        %v1606 = vmul.f32 %v1605, %v1601
        %v1607 = vadd.f32 %v1597, %v1606
        %v1608 = vadd.f32 %v1352, -3.0
        %v1609 = vmax.f32 %v1608, 0.0
        %v1610 = vmin.f32 %v1609, 1.0
        %v1611 = vsub.f32 %v1610, %v1600
        %v1612 = vcombine.high %v1592, %v1592
        %v1614 = vmul.f32 %v1610, %v1612
        %v1615 = vmin.f32 %v1614, 1.0
        %v1616 = vmul.f32 %v1615, %v1611
        %v1617 = vadd.f32 %v1607, %v1616
        %v1618 = vsub.f32 %v1355, %v1499
        %v1619 = vmax.f32 %v1618, 0.0
        %v1620 = vadd.f32 %v1352, -2.0
        %v1621 = vmax.f32 %v1620, 0.0
        %v1622 = vmin.f32 %v1621, 1.0
        %v1623 = vsub.f32 %v1622, %v1610
        %v1624 = vadd.f32 %v1619, 1e-16
        %v1625 = vrcp.pop %v1624
        %v1626 = vmul.f32 %v1622, %v1625
        %v1627 = vmin.f32 %v1626, 1.0
        %v1628 = vmul.f32 %v1627, %v1623
        %v1629 = vadd.f32 %v1617, %v1628
        %v1631 = vrot.slane %v1355, 7
        %v1633 = vsub.f32 %v1355, %v1631
        %v1634 = vmax.f32 %v1633, 0.0
        %v1635 = vadd.f32 %v1352, -1.0
        %v1636 = vmax.f32 %v1635, 0.0
        %v1637 = vmin.f32 %v1636, 1.0
        %v1638 = vsub.f32 %v1637, %v1622
        %v1639 = vadd.f32 %v1634, 1e-16
        %v1640 = vrcp.pop %v1639
        %v1643 = vunpack.c.l.s4 1966171168
        %v1644 = vunpack.c.0.s8 %v1643
        %v1645 = vlaneseq
        %v1646 = vshrl.u32 %v1645, 7
        %v1647 = vsub.s32 %v1644, %v1646
        %v1648 = vrot.slane %v1640, %v1647
        %v1649 = vcombine.high %v1648, %v1648
        %v1651 = vunpack.c.l.s4 1966171168
        %v1652 = vunpack.c.0.s8 %v1651
        %v1653 = vlaneseq
        %v1654 = vshrl.u32 %v1653, 7
        %v1655 = vsub.s32 %v1652, %v1654
        %v1656 = vrot.slane %v1648, %v1655
        %v1658 = vunpack.c.l.s4 1966171168
        %v1659 = vunpack.c.0.s8 %v1658
        %v1660 = vlaneseq
        %v1661 = vshrl.u32 %v1660, 7
        %v1662 = vsub.s32 %v1659, %v1661
        %v1663 = vrot.slane %v1649, %v1662
        %v1665 = vmul.f32 %v1637, %v1663
        %v1666 = vmin.f32 %v1665, 1.0
        %v1667 = vmul.f32 %v1666, %v1638
        %v1668 = vadd.f32 %v1629, %v1667
        %v1669 = vadd.f32 %v1352, 0.0
        %v1670 = vmax.f32 %v1669, 0.0
        %v1671 = vmin.f32 %v1670, 1.0
        %v1672 = vsub.f32 %v1671, %v1637
        %v1673 = vcombine.high %v1656, %v1656
        %v1675 = vmul.f32 %v1671, %v1673
        %v1676 = vmin.f32 %v1675, 1.0
        %v1677 = vmul.f32 %v1676, %v1672
        %v1678 = vadd.f32 %v1668, %v1677
        %v1679 = vadd.f32 %v1352, 1.0
        %v1680 = vmax.f32 %v1679, 0.0
        %v1681 = vmin.f32 %v1680, 1.0
        %v1682 = vsub.f32 %v1681, %v1671
        %v1683 = vrcp.pop 64.0
        %v1684 = vmul.f32 %v1681, %v1683
        %v1685 = vmin.f32 %v1684, 1.0
        %v1686 = vmul.f32 %v1685, %v1682
        %v1687 = vadd.f32 %v1678, %v1686
        %v1688 = vmax.f32 %v1681, 1e-16
        %v1689 = vrcp.pop %v1688
        %v1690 = vmul.f32 %v1687, %v1689
        %vm1691 = vcmask 516096
        %1692 = vst.msk [vmem:[%s265] sm:$0x1] %vm1691, %v1690
      $region40: #{custom_pixel_ap_loss.1} parent=31 // pred_fallthru
        _
      %p1693 = scmp.lt.s32.totalorder %s19, 1
      %s1694 = scalar_select %p1693, %s19, 1
      %p1695 = scmp.lt.s32.totalorder %s20, 0
      %s1696 = scalar_select %p1695, %s20, 0
      %s1697 = sadd.s32 %s1696, %s1694
      %s1698 = scalar_lea.vmem %s3, %s1697
      // Predicated region
      $region41: #{custom_pixel_ap_loss.1} parent=31 // pred_check
        %p1699 = pneg %p137
      $region42: #{custom_pixel_ap_loss.1} parent=31 // pred_check_branch
        %1701 = sbr.rel (%p1699) target = $region44
      $region43: #{custom_pixel_ap_loss.1} parent=31 // pred_region
        _
      $region44: #{custom_pixel_ap_loss.1} parent=31 // pred_fallthru
        _
    $region32: #{custom_pixel_ap_loss.1} parent=5 // pred_fallthru
      _
    %p1702 = scmp.le.s32.totalorder 2, %s9
    // Predicated region
    $region45: #{custom_pixel_ap_loss.1} parent=5 // pred_check
      %p1703 = pneg %p1702
    $region46: #{custom_pixel_ap_loss.1} parent=5 // pred_check_branch
      %1705 = sbr.rel (%p1703) target = $region48
    $region47: #{custom_pixel_ap_loss.1} parent=5 // pred_region
      %s1706 = ssub.s32 %s9, 2
      // Predicated region
      $region49: #{custom_pixel_ap_loss.1} parent=47 // pred_check
        %p1707 = pneg %p143
      $region50: #{custom_pixel_ap_loss.1} parent=47 // pred_check_branch
        %1709 = sbr.rel (%p1707) target = $region52
      $region51: #{custom_pixel_ap_loss.1} parent=47 // pred_region
        %p1710 = scmp.lt.s32.totalorder %s22, 1
        %s1711 = scalar_select %p1710, %s22, 1
        %p1712 = scmp.lt.s32.totalorder %s23, 0
        %s1713 = scalar_select %p1712, %s23, 0
        %s1714 = sadd.s32 %s1713, %s1711
        %s1715 = scalar_lea.vmem %s3, %s1714
      $region52: #{custom_pixel_ap_loss.1} parent=47 // pred_fallthru
        _
    $region48: #{custom_pixel_ap_loss.1} parent=5 // pred_fallthru
      _
  $region6: #{custom_pixel_ap_loss.1} parent=0 // loop_footer
    %s13 = sadd.s32 1, %s9
  $region7: #{custom_pixel_ap_loss.1} parent=0 // loop_footer_branch
    %8 = sbr.rel target = $region3
  $region8: #{custom_pixel_ap_loss.1} parent=0 // loop_exit
    _

</llo_original>
